<compile_context>
chip_gen: v6e
topology: v6e:2x2x1
jax: 0.10.0
libtpu: 0.0.40
codegen_flags: <defaults>
</compile_context>

<pallas_src>
import functools
import math

import jax
import jax.numpy as jnp
from jax.experimental import pallas as pl
from jax.experimental.pallas import tpu as pltpu


_TILE_VMEM_BUDGET = 12 * 1024 * 1024   # per-step footprint target (double-buffered)
_VMEM_LIMIT = 32 * 1024 * 1024         # scoped-VMEM limit, safe on v5e/v6e/v7x


def _convt_kernel(x_ref, w_ref, b_ref, o_ref, *, cin, cout, kk, wk):
    """One (n, h-row-block) grid step.

    x_ref: (1, Cin, th, W*K)      input rows, lanes pre-repeated over kw
    w_ref: (K, Cin, Cout, W*K)    lane-periodic weights (one slab per kh)
    b_ref: (Cout, 1)              bias (kept f32)
    o_ref: (1, Cout, th, K*W*K)   final-layout output rows
                                  (lane index q = kh*W*K + w*K + kw)
    """
    # Load each input channel once; accumulate in f32 regardless of I/O dtype.
    xcs = [x_ref[0, c].astype(jnp.float32) for c in range(cin)]   # (th, W*K)
    wl = w_ref[...].astype(jnp.float32)                           # (K,Cin,Cout,W*K)
    bv = b_ref[...].astype(jnp.float32)                           # (Cout, 1)
    for kh in range(kk):
        lo = kh * wk
        for co in range(cout):
            # Fully-reduced per-(kh, co) chain: each output chunk is finished
            # before its store, keeping the ld/st slots off the critical path.
            acc = xcs[0] * wl[kh, 0, co][None, :]
            for c in range(1, cin):
                acc = acc + xcs[c] * wl[kh, c, co][None, :]
            acc = acc + bv[co]
            o_ref[0, co, :, lo:lo + wk] = acc.astype(o_ref.dtype)


def _const_spec(shape, index_map):
    """Grid-invariant block: request single-buffering when supported."""
    if hasattr(pl, "Buffered"):
        try:
            return pl.BlockSpec(shape, index_map, pipeline_mode=pl.Buffered(1))
        except TypeError:
            pass   # older Pallas without BlockSpec(pipeline_mode=...)
    return pl.BlockSpec(shape, index_map)


def _pick_row_tile(H, N, max_rows):
    """Largest legal H-row tile: a multiple-of-8 divisor of H (or H itself)."""
    cap = max(8, min(H, max_rows))
    if N == 1:
        # v7x has two TensorCores: keep >= 2 parallel grid steps when possible.
        cap = min(cap, max(8, H // 2))
    if H <= cap:
        return H
    d = (cap // 8) * 8
    while d >= 8:
        if H % d == 0:
            return d
        d -= 8
    return H   # no multiple-of-8 divisor fits; take the full extent


def transposed_convolution(x, weight, bias, kernel_size, stride, io_dtype=None):
    """ConvTranspose2d forward (padding=0), NCHW in / NCHW out.

    x:      (N, Cin, H, W)
    weight: (Cin, Cout, KH, KW)   (PyTorch ConvTranspose2d layout)
    bias:   (Cout,)
    io_dtype: dtype for the HBM-facing tensors and the output (e.g.
              jnp.bfloat16); accumulation is always f32 in-kernel.
    """
    N, Cin, H, W = x.shape
    Cin_w, Cout, KH, KW = weight.shape
    assert Cin_w == Cin and KH == kernel_size and KW == kernel_size
    assert kernel_size == stride, "only kernel_size == stride implemented"
    K = kernel_size
    WK = W * K
    KWK = K * WK
    io_dtype = jnp.dtype(io_dtype if io_dtype is not None else x.dtype)
    eb = io_dtype.itemsize

    # ---- row-tile selection (VMEM is not the binding limit; see budget) -----
    per_row = 2 * (Cin * WK + Cout * KWK) * eb      # double-buffered in + out
    max_rows = max(8, _TILE_VMEM_BUDGET // per_row)
    th = _pick_row_tile(H, N, max_rows)
    grid = (N, pl.cdiv(H, th))                      # th always divides H here

    # ---- host-side prep: only small-stream work ------------------------------
    # x repeated Kx along W (pre-interleave over kw); cast first so the repeated
    # stream is already in the narrow I/O dtype.
    x_rep = jnp.repeat(x.astype(io_dtype), K, axis=-1)             # (N,Cin,H,W*K)
    # Lane-periodic weight: wl[kh, ci, co, w*K + kw] = weight[ci, co, kh, kw].
    wl = jnp.tile(jnp.transpose(weight, (2, 0, 1, 3)).astype(io_dtype),
                  (1, 1, 1, W))                                    # (K,Cin,Cout,W*K)
    b2 = bias.astype(jnp.float32).reshape(Cout, 1)                 # (Cout, 1)

    kernel = functools.partial(_convt_kernel, cin=Cin, cout=Cout, kk=K, wk=WK)

    cost = pl.CostEstimate(
        flops=2 * N * Cin * Cout * K * K * H * W,
        transcendentals=0,
        bytes_accessed=(N * Cin * H * WK * eb + wl.size * eb + b2.size * 4
                        + N * Cout * H * KWK * eb),
    )

    grid_spec = pltpu.PrefetchScalarGridSpec(
        num_scalar_prefetch=0,
        grid=grid,
        in_specs=[
            pl.BlockSpec((1, Cin, th, WK), lambda n, j: (n, 0, j, 0)),
            _const_spec((K, Cin, Cout, WK), lambda n, j: (0, 0, 0, 0)),
            _const_spec((Cout, 1), lambda n, j: (0, 0)),
        ],
        out_specs=pl.BlockSpec((1, Cout, th, KWK), lambda n, j: (n, 0, j, 0)),
    )

    # out_shape (N, Cout, H, K*W*K) is byte-identical to the final
    # (N, Cout, H*K, W*K); the reshape below is a free contiguous merge/split.
    y = pl.pallas_call(
        kernel,
        out_shape=jax.ShapeDtypeStruct((N, Cout, H, KWK), io_dtype),
        grid_spec=grid_spec,
        compiler_params=pltpu.CompilerParams(
            dimension_semantics=("parallel", "parallel"),
            vmem_limit_bytes=_VMEM_LIMIT,
        ),
        cost_estimate=cost,
    )(x_rep, wl, b2)

    return y.reshape(N, Cout, H * K, W * K)


def _reference(x, weight, bias, K):
    # Valid only for kernel_size == stride (non-overlapping taps).
    N, Cin, H, W = x.shape
    Cout = weight.shape[1]
    y = jnp.einsum("nchw,coij->nohiwj", x, weight)          # (N,Cout,H,KH,W,KW)
    y = y.reshape(N, Cout, H * K, W * K)
    return y + bias[None, :, None, None]


if __name__ == "__main__":
    in_channels, out_channels = 4, 8
    kernel_size = stride = 2
    N, H, W = 2, 16, 16

    key = jax.random.PRNGKey(0)
    kx, kw, kb = jax.random.split(key, 3)

    x = jax.random.normal(kx, (N, in_channels, H, W), dtype=jnp.float32)
    # Deterministic param init (uniform, scaled roughly like PyTorch's default).
    fan = out_channels * kernel_size * kernel_size
    bound = 1.0 / math.sqrt(float(fan))
    weight = jax.random.uniform(
        kw, (in_channels, out_channels, kernel_size, kernel_size),
        minval=-bound, maxval=bound, dtype=jnp.float32)
    bias = jax.random.uniform(
        kb, (out_channels,), minval=-bound, maxval=bound, dtype=jnp.float32)

    ref = _reference(x, weight, bias, kernel_size)
    out_shape_expected = (N, out_channels, (H - 1) * stride + kernel_size,
                          (W - 1) * stride + kernel_size)

    # f32 I/O path: exact-layout check against the reference.
    out = transposed_convolution(x, weight, bias, kernel_size, stride)
    out = jax.block_until_ready(out)
    assert out.shape == out_shape_expected
    assert out.dtype == x.dtype
    assert jnp.allclose(out, ref, atol=1e-5, rtol=1e-5)

    # bf16 I/O path (perf mode): halved HBM streams, f32 accumulation in-kernel.
    out_bf16 = transposed_convolution(x, weight, bias, kernel_size, stride,
                                      io_dtype=jnp.bfloat16)
    out_bf16 = jax.block_until_ready(out_bf16)
    assert out_bf16.shape == out_shape_expected
    assert out_bf16.dtype == jnp.bfloat16
    assert jnp.allclose(out_bf16.astype(jnp.float32), ref, atol=5e-2, rtol=5e-2)

    print("KERNEL_OK")
</pallas_src>

<mosaic_0001>
module attributes {stable_mosaic.version = 11 : i64} {
  func.func @_convt_kernel(%arg0: i32, %arg1: i32, %arg2: memref<1x4x16x32xf32, #tpu.memory_space<vmem>>, %arg3: memref<2x4x8x32xf32, #tpu.memory_space<vmem>>, %arg4: memref<8x1xf32, #tpu.memory_space<vmem>>, %arg5: memref<1x8x16x64xf32, #tpu.memory_space<vmem>>) attributes {dimension_semantics = [#tpu.dimension_semantics<parallel>, #tpu.dimension_semantics<parallel>], iteration_bounds = array<i64: 2, 1>, scalar_prefetch = 0 : i64, scratch_operands = 0 : i64, tpu.core_type = #tpu.core_type<tc>, window_params = [{transform_indices = @transform_0, window_bounds = array<i64: 1, 4, 16, 32>}, {pipeline_mode = #tpu.pipeline_mode<synchronous>, transform_indices = @transform_1, window_bounds = array<i64: 2, 4, 8, 32>}, {pipeline_mode = #tpu.pipeline_mode<synchronous>, transform_indices = @transform_2, window_bounds = array<i64: 8, 1>}, {transform_indices = @transform_3, window_bounds = array<i64: 1, 8, 16, 64>}]} {
    %c0 = arith.constant 0 : index
    %c0_0 = arith.constant 0 : index
    %c0_1 = arith.constant 0 : index
    %c0_2 = arith.constant 0 : index
    %0 = vector.load %arg2[%c0, %c0_0, %c0_1, %c0_2] : memref<1x4x16x32xf32, #tpu.memory_space<vmem>>, vector<1x1x16x32xf32>
    %1 = vector.shape_cast %0 : vector<1x1x16x32xf32> to vector<16x32xf32>
    %c0_3 = arith.constant 0 : index
    %c1 = arith.constant 1 : index
    %c0_4 = arith.constant 0 : index
    %c0_5 = arith.constant 0 : index
    %2 = vector.load %arg2[%c0_3, %c1, %c0_4, %c0_5] : memref<1x4x16x32xf32, #tpu.memory_space<vmem>>, vector<1x1x16x32xf32>
    %3 = vector.shape_cast %2 : vector<1x1x16x32xf32> to vector<16x32xf32>
    %c0_6 = arith.constant 0 : index
    %c2 = arith.constant 2 : index
    %c0_7 = arith.constant 0 : index
    %c0_8 = arith.constant 0 : index
    %4 = vector.load %arg2[%c0_6, %c2, %c0_7, %c0_8] : memref<1x4x16x32xf32, #tpu.memory_space<vmem>>, vector<1x1x16x32xf32>
    %5 = vector.shape_cast %4 : vector<1x1x16x32xf32> to vector<16x32xf32>
    %c0_9 = arith.constant 0 : index
    %c3 = arith.constant 3 : index
    %c0_10 = arith.constant 0 : index
    %c0_11 = arith.constant 0 : index
    %6 = vector.load %arg2[%c0_9, %c3, %c0_10, %c0_11] : memref<1x4x16x32xf32, #tpu.memory_space<vmem>>, vector<1x1x16x32xf32>
    %7 = vector.shape_cast %6 : vector<1x1x16x32xf32> to vector<16x32xf32>
    %c0_12 = arith.constant 0 : index
    %c0_13 = arith.constant 0 : index
    %c0_14 = arith.constant 0 : index
    %c0_15 = arith.constant 0 : index
    %8 = vector.load %arg3[%c0_12, %c0_13, %c0_14, %c0_15] : memref<2x4x8x32xf32, #tpu.memory_space<vmem>>, vector<2x4x8x32xf32>
    %c0_16 = arith.constant 0 : index
    %c0_17 = arith.constant 0 : index
    %9 = vector.load %arg4[%c0_16, %c0_17] : memref<8x1xf32, #tpu.memory_space<vmem>>, vector<8x1xf32>
    %10 = vector.extract_strided_slice %8 {offsets = [0, 0, 0, 0], sizes = [1, 1, 1, 32], strides = [1, 1, 1, 1]} : vector<2x4x8x32xf32> to vector<1x1x1x32xf32>
    %11 = vector.shape_cast %10 : vector<1x1x1x32xf32> to vector<32xf32>
    %12 = vector.shape_cast %11 : vector<32xf32> to vector<1x32xf32>
    %13 = vector.broadcast %12 : vector<1x32xf32> to vector<16x32xf32>
    %14 = arith.mulf %1, %13 : vector<16x32xf32>
    %15 = vector.extract_strided_slice %8 {offsets = [0, 1, 0, 0], sizes = [1, 1, 1, 32], strides = [1, 1, 1, 1]} : vector<2x4x8x32xf32> to vector<1x1x1x32xf32>
    %16 = vector.shape_cast %15 : vector<1x1x1x32xf32> to vector<32xf32>
    %17 = vector.shape_cast %16 : vector<32xf32> to vector<1x32xf32>
    %18 = vector.broadcast %17 : vector<1x32xf32> to vector<16x32xf32>
    %19 = arith.mulf %3, %18 : vector<16x32xf32>
    %20 = arith.addf %14, %19 : vector<16x32xf32>
    %21 = vector.extract_strided_slice %8 {offsets = [0, 2, 0, 0], sizes = [1, 1, 1, 32], strides = [1, 1, 1, 1]} : vector<2x4x8x32xf32> to vector<1x1x1x32xf32>
    %22 = vector.shape_cast %21 : vector<1x1x1x32xf32> to vector<32xf32>
    %23 = vector.shape_cast %22 : vector<32xf32> to vector<1x32xf32>
    %24 = vector.broadcast %23 : vector<1x32xf32> to vector<16x32xf32>
    %25 = arith.mulf %5, %24 : vector<16x32xf32>
    %26 = arith.addf %20, %25 : vector<16x32xf32>
    %27 = vector.extract_strided_slice %8 {offsets = [0, 3, 0, 0], sizes = [1, 1, 1, 32], strides = [1, 1, 1, 1]} : vector<2x4x8x32xf32> to vector<1x1x1x32xf32>
    %28 = vector.shape_cast %27 : vector<1x1x1x32xf32> to vector<32xf32>
    %29 = vector.shape_cast %28 : vector<32xf32> to vector<1x32xf32>
    %30 = vector.broadcast %29 : vector<1x32xf32> to vector<16x32xf32>
    %31 = arith.mulf %7, %30 : vector<16x32xf32>
    %32 = arith.addf %26, %31 : vector<16x32xf32>
    %33 = vector.extract_strided_slice %9 {offsets = [0, 0], sizes = [1, 1], strides = [1, 1]} : vector<8x1xf32> to vector<1x1xf32>
    %34 = vector.shape_cast %33 : vector<1x1xf32> to vector<1xf32>
    %35 = vector.shape_cast %34 : vector<1xf32> to vector<1x1xf32>
    %36 = vector.broadcast %35 : vector<1x1xf32> to vector<16x32xf32>
    %37 = arith.addf %32, %36 : vector<16x32xf32>
    %c0_18 = arith.constant 0 : index
    %c0_19 = arith.constant 0 : index
    %c0_20 = arith.constant 0 : index
    %c0_21 = arith.constant 0 : index
    %38 = vector.load %arg5[%c0_18, %c0_19, %c0_20, %c0_21] : memref<1x8x16x64xf32, #tpu.memory_space<vmem>>, vector<1x1x16x32xf32>
    %39 = vector.shape_cast %38 : vector<1x1x16x32xf32> to vector<16x32xf32>
    %40 = vector.shape_cast %37 : vector<16x32xf32> to vector<1x1x16x32xf32>
    tpu.vector_store %arg5[%c0_18, %c0_19, %c0_20, %c0_21], %40 {strides = array<i32>} : memref<1x8x16x64xf32, #tpu.memory_space<vmem>>, vector<1x1x16x32xf32>,
    %41 = vector.extract_strided_slice %8 {offsets = [0, 0, 1, 0], sizes = [1, 1, 1, 32], strides = [1, 1, 1, 1]} : vector<2x4x8x32xf32> to vector<1x1x1x32xf32>
    %42 = vector.shape_cast %41 : vector<1x1x1x32xf32> to vector<32xf32>
    %43 = vector.shape_cast %42 : vector<32xf32> to vector<1x32xf32>
    %44 = vector.broadcast %43 : vector<1x32xf32> to vector<16x32xf32>
    %45 = arith.mulf %1, %44 : vector<16x32xf32>
    %46 = vector.extract_strided_slice %8 {offsets = [0, 1, 1, 0], sizes = [1, 1, 1, 32], strides = [1, 1, 1, 1]} : vector<2x4x8x32xf32> to vector<1x1x1x32xf32>
    %47 = vector.shape_cast %46 : vector<1x1x1x32xf32> to vector<32xf32>
    %48 = vector.shape_cast %47 : vector<32xf32> to vector<1x32xf32>
    %49 = vector.broadcast %48 : vector<1x32xf32> to vector<16x32xf32>
    %50 = arith.mulf %3, %49 : vector<16x32xf32>
    %51 = arith.addf %45, %50 : vector<16x32xf32>
    %52 = vector.extract_strided_slice %8 {offsets = [0, 2, 1, 0], sizes = [1, 1, 1, 32], strides = [1, 1, 1, 1]} : vector<2x4x8x32xf32> to vector<1x1x1x32xf32>
    %53 = vector.shape_cast %52 : vector<1x1x1x32xf32> to vector<32xf32>
    %54 = vector.shape_cast %53 : vector<32xf32> to vector<1x32xf32>
    %55 = vector.broadcast %54 : vector<1x32xf32> to vector<16x32xf32>
    %56 = arith.mulf %5, %55 : vector<16x32xf32>
    %57 = arith.addf %51, %56 : vector<16x32xf32>
    %58 = vector.extract_strided_slice %8 {offsets = [0, 3, 1, 0], sizes = [1, 1, 1, 32], strides = [1, 1, 1, 1]} : vector<2x4x8x32xf32> to vector<1x1x1x32xf32>
    %59 = vector.shape_cast %58 : vector<1x1x1x32xf32> to vector<32xf32>
    %60 = vector.shape_cast %59 : vector<32xf32> to vector<1x32xf32>
    %61 = vector.broadcast %60 : vector<1x32xf32> to vector<16x32xf32>
    %62 = arith.mulf %7, %61 : vector<16x32xf32>
    %63 = arith.addf %57, %62 : vector<16x32xf32>
    %64 = vector.extract_strided_slice %9 {offsets = [1, 0], sizes = [1, 1], strides = [1, 1]} : vector<8x1xf32> to vector<1x1xf32>
    %65 = vector.shape_cast %64 : vector<1x1xf32> to vector<1xf32>
    %66 = vector.shape_cast %65 : vector<1xf32> to vector<1x1xf32>
    %67 = vector.broadcast %66 : vector<1x1xf32> to vector<16x32xf32>
    %68 = arith.addf %63, %67 : vector<16x32xf32>
    %c0_22 = arith.constant 0 : index
    %c1_23 = arith.constant 1 : index
    %c0_24 = arith.constant 0 : index
    %c0_25 = arith.constant 0 : index
    %69 = vector.load %arg5[%c0_22, %c1_23, %c0_24, %c0_25] : memref<1x8x16x64xf32, #tpu.memory_space<vmem>>, vector<1x1x16x32xf32>
    %70 = vector.shape_cast %69 : vector<1x1x16x32xf32> to vector<16x32xf32>
    %71 = vector.shape_cast %68 : vector<16x32xf32> to vector<1x1x16x32xf32>
    tpu.vector_store %arg5[%c0_22, %c1_23, %c0_24, %c0_25], %71 {strides = array<i32>} : memref<1x8x16x64xf32, #tpu.memory_space<vmem>>, vector<1x1x16x32xf32>,
    %72 = vector.extract_strided_slice %8 {offsets = [0, 0, 2, 0], sizes = [1, 1, 1, 32], strides = [1, 1, 1, 1]} : vector<2x4x8x32xf32> to vector<1x1x1x32xf32>
    %73 = vector.shape_cast %72 : vector<1x1x1x32xf32> to vector<32xf32>
    %74 = vector.shape_cast %73 : vector<32xf32> to vector<1x32xf32>
    %75 = vector.broadcast %74 : vector<1x32xf32> to vector<16x32xf32>
    %76 = arith.mulf %1, %75 : vector<16x32xf32>
    %77 = vector.extract_strided_slice %8 {offsets = [0, 1, 2, 0], sizes = [1, 1, 1, 32], strides = [1, 1, 1, 1]} : vector<2x4x8x32xf32> to vector<1x1x1x32xf32>
    %78 = vector.shape_cast %77 : vector<1x1x1x32xf32> to vector<32xf32>
    %79 = vector.shape_cast %78 : vector<32xf32> to vector<1x32xf32>
    %80 = vector.broadcast %79 : vector<1x32xf32> to vector<16x32xf32>
    %81 = arith.mulf %3, %80 : vector<16x32xf32>
    %82 = arith.addf %76, %81 : vector<16x32xf32>
    %83 = vector.extract_strided_slice %8 {offsets = [0, 2, 2, 0], sizes = [1, 1, 1, 32], strides = [1, 1, 1, 1]} : vector<2x4x8x32xf32> to vector<1x1x1x32xf32>
    %84 = vector.shape_cast %83 : vector<1x1x1x32xf32> to vector<32xf32>
    %85 = vector.shape_cast %84 : vector<32xf32> to vector<1x32xf32>
    %86 = vector.broadcast %85 : vector<1x32xf32> to vector<16x32xf32>
    %87 = arith.mulf %5, %86 : vector<16x32xf32>
    %88 = arith.addf %82, %87 : vector<16x32xf32>
    %89 = vector.extract_strided_slice %8 {offsets = [0, 3, 2, 0], sizes = [1, 1, 1, 32], strides = [1, 1, 1, 1]} : vector<2x4x8x32xf32> to vector<1x1x1x32xf32>
    %90 = vector.shape_cast %89 : vector<1x1x1x32xf32> to vector<32xf32>
    %91 = vector.shape_cast %90 : vector<32xf32> to vector<1x32xf32>
    %92 = vector.broadcast %91 : vector<1x32xf32> to vector<16x32xf32>
    %93 = arith.mulf %7, %92 : vector<16x32xf32>
    %94 = arith.addf %88, %93 : vector<16x32xf32>
    %95 = vector.extract_strided_slice %9 {offsets = [2, 0], sizes = [1, 1], strides = [1, 1]} : vector<8x1xf32> to vector<1x1xf32>
    %96 = vector.shape_cast %95 : vector<1x1xf32> to vector<1xf32>
    %97 = vector.shape_cast %96 : vector<1xf32> to vector<1x1xf32>
    %98 = vector.broadcast %97 : vector<1x1xf32> to vector<16x32xf32>
    %99 = arith.addf %94, %98 : vector<16x32xf32>
    %c0_26 = arith.constant 0 : index
    %c2_27 = arith.constant 2 : index
    %c0_28 = arith.constant 0 : index
    %c0_29 = arith.constant 0 : index
    %100 = vector.load %arg5[%c0_26, %c2_27, %c0_28, %c0_29] : memref<1x8x16x64xf32, #tpu.memory_space<vmem>>, vector<1x1x16x32xf32>
    %101 = vector.shape_cast %100 : vector<1x1x16x32xf32> to vector<16x32xf32>
    %102 = vector.shape_cast %99 : vector<16x32xf32> to vector<1x1x16x32xf32>
    tpu.vector_store %arg5[%c0_26, %c2_27, %c0_28, %c0_29], %102 {strides = array<i32>} : memref<1x8x16x64xf32, #tpu.memory_space<vmem>>, vector<1x1x16x32xf32>,
    %103 = vector.extract_strided_slice %8 {offsets = [0, 0, 3, 0], sizes = [1, 1, 1, 32], strides = [1, 1, 1, 1]} : vector<2x4x8x32xf32> to vector<1x1x1x32xf32>
    %104 = vector.shape_cast %103 : vector<1x1x1x32xf32> to vector<32xf32>
    %105 = vector.shape_cast %104 : vector<32xf32> to vector<1x32xf32>
    %106 = vector.broadcast %105 : vector<1x32xf32> to vector<16x32xf32>
    %107 = arith.mulf %1, %106 : vector<16x32xf32>
    %108 = vector.extract_strided_slice %8 {offsets = [0, 1, 3, 0], sizes = [1, 1, 1, 32], strides = [1, 1, 1, 1]} : vector<2x4x8x32xf32> to vector<1x1x1x32xf32>
    %109 = vector.shape_cast %108 : vector<1x1x1x32xf32> to vector<32xf32>
    %110 = vector.shape_cast %109 : vector<32xf32> to vector<1x32xf32>
    %111 = vector.broadcast %110 : vector<1x32xf32> to vector<16x32xf32>
    %112 = arith.mulf %3, %111 : vector<16x32xf32>
    %113 = arith.addf %107, %112 : vector<16x32xf32>
    %114 = vector.extract_strided_slice %8 {offsets = [0, 2, 3, 0], sizes = [1, 1, 1, 32], strides = [1, 1, 1, 1]} : vector<2x4x8x32xf32> to vector<1x1x1x32xf32>
    %115 = vector.shape_cast %114 : vector<1x1x1x32xf32> to vector<32xf32>
    %116 = vector.shape_cast %115 : vector<32xf32> to vector<1x32xf32>
    %117 = vector.broadcast %116 : vector<1x32xf32> to vector<16x32xf32>
    %118 = arith.mulf %5, %117 : vector<16x32xf32>
    %119 = arith.addf %113, %118 : vector<16x32xf32>
    %120 = vector.extract_strided_slice %8 {offsets = [0, 3, 3, 0], sizes = [1, 1, 1, 32], strides = [1, 1, 1, 1]} : vector<2x4x8x32xf32> to vector<1x1x1x32xf32>
    %121 = vector.shape_cast %120 : vector<1x1x1x32xf32> to vector<32xf32>
    %122 = vector.shape_cast %121 : vector<32xf32> to vector<1x32xf32>
    %123 = vector.broadcast %122 : vector<1x32xf32> to vector<16x32xf32>
    %124 = arith.mulf %7, %123 : vector<16x32xf32>
    %125 = arith.addf %119, %124 : vector<16x32xf32>
    %126 = vector.extract_strided_slice %9 {offsets = [3, 0], sizes = [1, 1], strides = [1, 1]} : vector<8x1xf32> to vector<1x1xf32>
    %127 = vector.shape_cast %126 : vector<1x1xf32> to vector<1xf32>
    %128 = vector.shape_cast %127 : vector<1xf32> to vector<1x1xf32>
    %129 = vector.broadcast %128 : vector<1x1xf32> to vector<16x32xf32>
    %130 = arith.addf %125, %129 : vector<16x32xf32>
    %c0_30 = arith.constant 0 : index
    %c3_31 = arith.constant 3 : index
    %c0_32 = arith.constant 0 : index
    %c0_33 = arith.constant 0 : index
    %131 = vector.load %arg5[%c0_30, %c3_31, %c0_32, %c0_33] : memref<1x8x16x64xf32, #tpu.memory_space<vmem>>, vector<1x1x16x32xf32>
    %132 = vector.shape_cast %131 : vector<1x1x16x32xf32> to vector<16x32xf32>
    %133 = vector.shape_cast %130 : vector<16x32xf32> to vector<1x1x16x32xf32>
    tpu.vector_store %arg5[%c0_30, %c3_31, %c0_32, %c0_33], %133 {strides = array<i32>} : memref<1x8x16x64xf32, #tpu.memory_space<vmem>>, vector<1x1x16x32xf32>,
    %134 = vector.extract_strided_slice %8 {offsets = [0, 0, 4, 0], sizes = [1, 1, 1, 32], strides = [1, 1, 1, 1]} : vector<2x4x8x32xf32> to vector<1x1x1x32xf32>
    %135 = vector.shape_cast %134 : vector<1x1x1x32xf32> to vector<32xf32>
    %136 = vector.shape_cast %135 : vector<32xf32> to vector<1x32xf32>
    %137 = vector.broadcast %136 : vector<1x32xf32> to vector<16x32xf32>
    %138 = arith.mulf %1, %137 : vector<16x32xf32>
    %139 = vector.extract_strided_slice %8 {offsets = [0, 1, 4, 0], sizes = [1, 1, 1, 32], strides = [1, 1, 1, 1]} : vector<2x4x8x32xf32> to vector<1x1x1x32xf32>
    %140 = vector.shape_cast %139 : vector<1x1x1x32xf32> to vector<32xf32>
    %141 = vector.shape_cast %140 : vector<32xf32> to vector<1x32xf32>
    %142 = vector.broadcast %141 : vector<1x32xf32> to vector<16x32xf32>
    %143 = arith.mulf %3, %142 : vector<16x32xf32>
    %144 = arith.addf %138, %143 : vector<16x32xf32>
    %145 = vector.extract_strided_slice %8 {offsets = [0, 2, 4, 0], sizes = [1, 1, 1, 32], strides = [1, 1, 1, 1]} : vector<2x4x8x32xf32> to vector<1x1x1x32xf32>
    %146 = vector.shape_cast %145 : vector<1x1x1x32xf32> to vector<32xf32>
    %147 = vector.shape_cast %146 : vector<32xf32> to vector<1x32xf32>
    %148 = vector.broadcast %147 : vector<1x32xf32> to vector<16x32xf32>
    %149 = arith.mulf %5, %148 : vector<16x32xf32>
    %150 = arith.addf %144, %149 : vector<16x32xf32>
    %151 = vector.extract_strided_slice %8 {offsets = [0, 3, 4, 0], sizes = [1, 1, 1, 32], strides = [1, 1, 1, 1]} : vector<2x4x8x32xf32> to vector<1x1x1x32xf32>
    %152 = vector.shape_cast %151 : vector<1x1x1x32xf32> to vector<32xf32>
    %153 = vector.shape_cast %152 : vector<32xf32> to vector<1x32xf32>
    %154 = vector.broadcast %153 : vector<1x32xf32> to vector<16x32xf32>
    %155 = arith.mulf %7, %154 : vector<16x32xf32>
    %156 = arith.addf %150, %155 : vector<16x32xf32>
    %157 = vector.extract_strided_slice %9 {offsets = [4, 0], sizes = [1, 1], strides = [1, 1]} : vector<8x1xf32> to vector<1x1xf32>
    %158 = vector.shape_cast %157 : vector<1x1xf32> to vector<1xf32>
    %159 = vector.shape_cast %158 : vector<1xf32> to vector<1x1xf32>
    %160 = vector.broadcast %159 : vector<1x1xf32> to vector<16x32xf32>
    %161 = arith.addf %156, %160 : vector<16x32xf32>
    %c0_34 = arith.constant 0 : index
    %c4 = arith.constant 4 : index
    %c0_35 = arith.constant 0 : index
    %c0_36 = arith.constant 0 : index
    %162 = vector.load %arg5[%c0_34, %c4, %c0_35, %c0_36] : memref<1x8x16x64xf32, #tpu.memory_space<vmem>>, vector<1x1x16x32xf32>
    %163 = vector.shape_cast %162 : vector<1x1x16x32xf32> to vector<16x32xf32>
    %164 = vector.shape_cast %161 : vector<16x32xf32> to vector<1x1x16x32xf32>
    tpu.vector_store %arg5[%c0_34, %c4, %c0_35, %c0_36], %164 {strides = array<i32>} : memref<1x8x16x64xf32, #tpu.memory_space<vmem>>, vector<1x1x16x32xf32>,
    %165 = vector.extract_strided_slice %8 {offsets = [0, 0, 5, 0], sizes = [1, 1, 1, 32], strides = [1, 1, 1, 1]} : vector<2x4x8x32xf32> to vector<1x1x1x32xf32>
    %166 = vector.shape_cast %165 : vector<1x1x1x32xf32> to vector<32xf32>
    %167 = vector.shape_cast %166 : vector<32xf32> to vector<1x32xf32>
    %168 = vector.broadcast %167 : vector<1x32xf32> to vector<16x32xf32>
    %169 = arith.mulf %1, %168 : vector<16x32xf32>
    %170 = vector.extract_strided_slice %8 {offsets = [0, 1, 5, 0], sizes = [1, 1, 1, 32], strides = [1, 1, 1, 1]} : vector<2x4x8x32xf32> to vector<1x1x1x32xf32>
    %171 = vector.shape_cast %170 : vector<1x1x1x32xf32> to vector<32xf32>
    %172 = vector.shape_cast %171 : vector<32xf32> to vector<1x32xf32>
    %173 = vector.broadcast %172 : vector<1x32xf32> to vector<16x32xf32>
    %174 = arith.mulf %3, %173 : vector<16x32xf32>
    %175 = arith.addf %169, %174 : vector<16x32xf32>
    %176 = vector.extract_strided_slice %8 {offsets = [0, 2, 5, 0], sizes = [1, 1, 1, 32], strides = [1, 1, 1, 1]} : vector<2x4x8x32xf32> to vector<1x1x1x32xf32>
    %177 = vector.shape_cast %176 : vector<1x1x1x32xf32> to vector<32xf32>
    %178 = vector.shape_cast %177 : vector<32xf32> to vector<1x32xf32>
    %179 = vector.broadcast %178 : vector<1x32xf32> to vector<16x32xf32>
    %180 = arith.mulf %5, %179 : vector<16x32xf32>
    %181 = arith.addf %175, %180 : vector<16x32xf32>
    %182 = vector.extract_strided_slice %8 {offsets = [0, 3, 5, 0], sizes = [1, 1, 1, 32], strides = [1, 1, 1, 1]} : vector<2x4x8x32xf32> to vector<1x1x1x32xf32>
    %183 = vector.shape_cast %182 : vector<1x1x1x32xf32> to vector<32xf32>
    %184 = vector.shape_cast %183 : vector<32xf32> to vector<1x32xf32>
    %185 = vector.broadcast %184 : vector<1x32xf32> to vector<16x32xf32>
    %186 = arith.mulf %7, %185 : vector<16x32xf32>
    %187 = arith.addf %181, %186 : vector<16x32xf32>
    %188 = vector.extract_strided_slice %9 {offsets = [5, 0], sizes = [1, 1], strides = [1, 1]} : vector<8x1xf32> to vector<1x1xf32>
    %189 = vector.shape_cast %188 : vector<1x1xf32> to vector<1xf32>
    %190 = vector.shape_cast %189 : vector<1xf32> to vector<1x1xf32>
    %191 = vector.broadcast %190 : vector<1x1xf32> to vector<16x32xf32>
    %192 = arith.addf %187, %191 : vector<16x32xf32>
    %c0_37 = arith.constant 0 : index
    %c5 = arith.constant 5 : index
    %c0_38 = arith.constant 0 : index
    %c0_39 = arith.constant 0 : index
    %193 = vector.load %arg5[%c0_37, %c5, %c0_38, %c0_39] : memref<1x8x16x64xf32, #tpu.memory_space<vmem>>, vector<1x1x16x32xf32>
    %194 = vector.shape_cast %193 : vector<1x1x16x32xf32> to vector<16x32xf32>
    %195 = vector.shape_cast %192 : vector<16x32xf32> to vector<1x1x16x32xf32>
    tpu.vector_store %arg5[%c0_37, %c5, %c0_38, %c0_39], %195 {strides = array<i32>} : memref<1x8x16x64xf32, #tpu.memory_space<vmem>>, vector<1x1x16x32xf32>,
    %196 = vector.extract_strided_slice %8 {offsets = [0, 0, 6, 0], sizes = [1, 1, 1, 32], strides = [1, 1, 1, 1]} : vector<2x4x8x32xf32> to vector<1x1x1x32xf32>
    %197 = vector.shape_cast %196 : vector<1x1x1x32xf32> to vector<32xf32>
    %198 = vector.shape_cast %197 : vector<32xf32> to vector<1x32xf32>
    %199 = vector.broadcast %198 : vector<1x32xf32> to vector<16x32xf32>
    %200 = arith.mulf %1, %199 : vector<16x32xf32>
    %201 = vector.extract_strided_slice %8 {offsets = [0, 1, 6, 0], sizes = [1, 1, 1, 32], strides = [1, 1, 1, 1]} : vector<2x4x8x32xf32> to vector<1x1x1x32xf32>
    %202 = vector.shape_cast %201 : vector<1x1x1x32xf32> to vector<32xf32>
    %203 = vector.shape_cast %202 : vector<32xf32> to vector<1x32xf32>
    %204 = vector.broadcast %203 : vector<1x32xf32> to vector<16x32xf32>
    %205 = arith.mulf %3, %204 : vector<16x32xf32>
    %206 = arith.addf %200, %205 : vector<16x32xf32>
    %207 = vector.extract_strided_slice %8 {offsets = [0, 2, 6, 0], sizes = [1, 1, 1, 32], strides = [1, 1, 1, 1]} : vector<2x4x8x32xf32> to vector<1x1x1x32xf32>
    %208 = vector.shape_cast %207 : vector<1x1x1x32xf32> to vector<32xf32>
    %209 = vector.shape_cast %208 : vector<32xf32> to vector<1x32xf32>
    %210 = vector.broadcast %209 : vector<1x32xf32> to vector<16x32xf32>
    %211 = arith.mulf %5, %210 : vector<16x32xf32>
    %212 = arith.addf %206, %211 : vector<16x32xf32>
    %213 = vector.extract_strided_slice %8 {offsets = [0, 3, 6, 0], sizes = [1, 1, 1, 32], strides = [1, 1, 1, 1]} : vector<2x4x8x32xf32> to vector<1x1x1x32xf32>
    %214 = vector.shape_cast %213 : vector<1x1x1x32xf32> to vector<32xf32>
    %215 = vector.shape_cast %214 : vector<32xf32> to vector<1x32xf32>
    %216 = vector.broadcast %215 : vector<1x32xf32> to vector<16x32xf32>
    %217 = arith.mulf %7, %216 : vector<16x32xf32>
    %218 = arith.addf %212, %217 : vector<16x32xf32>
    %219 = vector.extract_strided_slice %9 {offsets = [6, 0], sizes = [1, 1], strides = [1, 1]} : vector<8x1xf32> to vector<1x1xf32>
    %220 = vector.shape_cast %219 : vector<1x1xf32> to vector<1xf32>
    %221 = vector.shape_cast %220 : vector<1xf32> to vector<1x1xf32>
    %222 = vector.broadcast %221 : vector<1x1xf32> to vector<16x32xf32>
    %223 = arith.addf %218, %222 : vector<16x32xf32>
    %c0_40 = arith.constant 0 : index
    %c6 = arith.constant 6 : index
    %c0_41 = arith.constant 0 : index
    %c0_42 = arith.constant 0 : index
    %224 = vector.load %arg5[%c0_40, %c6, %c0_41, %c0_42] : memref<1x8x16x64xf32, #tpu.memory_space<vmem>>, vector<1x1x16x32xf32>
    %225 = vector.shape_cast %224 : vector<1x1x16x32xf32> to vector<16x32xf32>
    %226 = vector.shape_cast %223 : vector<16x32xf32> to vector<1x1x16x32xf32>
    tpu.vector_store %arg5[%c0_40, %c6, %c0_41, %c0_42], %226 {strides = array<i32>} : memref<1x8x16x64xf32, #tpu.memory_space<vmem>>, vector<1x1x16x32xf32>,
    %227 = vector.extract_strided_slice %8 {offsets = [0, 0, 7, 0], sizes = [1, 1, 1, 32], strides = [1, 1, 1, 1]} : vector<2x4x8x32xf32> to vector<1x1x1x32xf32>
    %228 = vector.shape_cast %227 : vector<1x1x1x32xf32> to vector<32xf32>
    %229 = vector.shape_cast %228 : vector<32xf32> to vector<1x32xf32>
    %230 = vector.broadcast %229 : vector<1x32xf32> to vector<16x32xf32>
    %231 = arith.mulf %1, %230 : vector<16x32xf32>
    %232 = vector.extract_strided_slice %8 {offsets = [0, 1, 7, 0], sizes = [1, 1, 1, 32], strides = [1, 1, 1, 1]} : vector<2x4x8x32xf32> to vector<1x1x1x32xf32>
    %233 = vector.shape_cast %232 : vector<1x1x1x32xf32> to vector<32xf32>
    %234 = vector.shape_cast %233 : vector<32xf32> to vector<1x32xf32>
    %235 = vector.broadcast %234 : vector<1x32xf32> to vector<16x32xf32>
    %236 = arith.mulf %3, %235 : vector<16x32xf32>
    %237 = arith.addf %231, %236 : vector<16x32xf32>
    %238 = vector.extract_strided_slice %8 {offsets = [0, 2, 7, 0], sizes = [1, 1, 1, 32], strides = [1, 1, 1, 1]} : vector<2x4x8x32xf32> to vector<1x1x1x32xf32>
    %239 = vector.shape_cast %238 : vector<1x1x1x32xf32> to vector<32xf32>
    %240 = vector.shape_cast %239 : vector<32xf32> to vector<1x32xf32>
    %241 = vector.broadcast %240 : vector<1x32xf32> to vector<16x32xf32>
    %242 = arith.mulf %5, %241 : vector<16x32xf32>
    %243 = arith.addf %237, %242 : vector<16x32xf32>
    %244 = vector.extract_strided_slice %8 {offsets = [0, 3, 7, 0], sizes = [1, 1, 1, 32], strides = [1, 1, 1, 1]} : vector<2x4x8x32xf32> to vector<1x1x1x32xf32>
    %245 = vector.shape_cast %244 : vector<1x1x1x32xf32> to vector<32xf32>
    %246 = vector.shape_cast %245 : vector<32xf32> to vector<1x32xf32>
    %247 = vector.broadcast %246 : vector<1x32xf32> to vector<16x32xf32>
    %248 = arith.mulf %7, %247 : vector<16x32xf32>
    %249 = arith.addf %243, %248 : vector<16x32xf32>
    %250 = vector.extract_strided_slice %9 {offsets = [7, 0], sizes = [1, 1], strides = [1, 1]} : vector<8x1xf32> to vector<1x1xf32>
    %251 = vector.shape_cast %250 : vector<1x1xf32> to vector<1xf32>
    %252 = vector.shape_cast %251 : vector<1xf32> to vector<1x1xf32>
    %253 = vector.broadcast %252 : vector<1x1xf32> to vector<16x32xf32>
    %254 = arith.addf %249, %253 : vector<16x32xf32>
    %c0_43 = arith.constant 0 : index
    %c7 = arith.constant 7 : index
    %c0_44 = arith.constant 0 : index
    %c0_45 = arith.constant 0 : index
    %255 = vector.load %arg5[%c0_43, %c7, %c0_44, %c0_45] : memref<1x8x16x64xf32, #tpu.memory_space<vmem>>, vector<1x1x16x32xf32>
    %256 = vector.shape_cast %255 : vector<1x1x16x32xf32> to vector<16x32xf32>
    %257 = vector.shape_cast %254 : vector<16x32xf32> to vector<1x1x16x32xf32>
    tpu.vector_store %arg5[%c0_43, %c7, %c0_44, %c0_45], %257 {strides = array<i32>} : memref<1x8x16x64xf32, #tpu.memory_space<vmem>>, vector<1x1x16x32xf32>,
    %258 = vector.extract_strided_slice %8 {offsets = [1, 0, 0, 0], sizes = [1, 1, 1, 32], strides = [1, 1, 1, 1]} : vector<2x4x8x32xf32> to vector<1x1x1x32xf32>
    %259 = vector.shape_cast %258 : vector<1x1x1x32xf32> to vector<32xf32>
    %260 = vector.shape_cast %259 : vector<32xf32> to vector<1x32xf32>
    %261 = vector.broadcast %260 : vector<1x32xf32> to vector<16x32xf32>
    %262 = arith.mulf %1, %261 : vector<16x32xf32>
    %263 = vector.extract_strided_slice %8 {offsets = [1, 1, 0, 0], sizes = [1, 1, 1, 32], strides = [1, 1, 1, 1]} : vector<2x4x8x32xf32> to vector<1x1x1x32xf32>
    %264 = vector.shape_cast %263 : vector<1x1x1x32xf32> to vector<32xf32>
    %265 = vector.shape_cast %264 : vector<32xf32> to vector<1x32xf32>
    %266 = vector.broadcast %265 : vector<1x32xf32> to vector<16x32xf32>
    %267 = arith.mulf %3, %266 : vector<16x32xf32>
    %268 = arith.addf %262, %267 : vector<16x32xf32>
    %269 = vector.extract_strided_slice %8 {offsets = [1, 2, 0, 0], sizes = [1, 1, 1, 32], strides = [1, 1, 1, 1]} : vector<2x4x8x32xf32> to vector<1x1x1x32xf32>
    %270 = vector.shape_cast %269 : vector<1x1x1x32xf32> to vector<32xf32>
    %271 = vector.shape_cast %270 : vector<32xf32> to vector<1x32xf32>
    %272 = vector.broadcast %271 : vector<1x32xf32> to vector<16x32xf32>
    %273 = arith.mulf %5, %272 : vector<16x32xf32>
    %274 = arith.addf %268, %273 : vector<16x32xf32>
    %275 = vector.extract_strided_slice %8 {offsets = [1, 3, 0, 0], sizes = [1, 1, 1, 32], strides = [1, 1, 1, 1]} : vector<2x4x8x32xf32> to vector<1x1x1x32xf32>
    %276 = vector.shape_cast %275 : vector<1x1x1x32xf32> to vector<32xf32>
    %277 = vector.shape_cast %276 : vector<32xf32> to vector<1x32xf32>
    %278 = vector.broadcast %277 : vector<1x32xf32> to vector<16x32xf32>
    %279 = arith.mulf %7, %278 : vector<16x32xf32>
    %280 = arith.addf %274, %279 : vector<16x32xf32>
    %281 = vector.extract_strided_slice %9 {offsets = [0, 0], sizes = [1, 1], strides = [1, 1]} : vector<8x1xf32> to vector<1x1xf32>
    %282 = vector.shape_cast %281 : vector<1x1xf32> to vector<1xf32>
    %283 = vector.shape_cast %282 : vector<1xf32> to vector<1x1xf32>
    %284 = vector.broadcast %283 : vector<1x1xf32> to vector<16x32xf32>
    %285 = arith.addf %280, %284 : vector<16x32xf32>
    %c0_46 = arith.constant 0 : index
    %c0_47 = arith.constant 0 : index
    %c0_48 = arith.constant 0 : index
    %c32 = arith.constant 32 : index
    %286 = vector.load %arg5[%c0_46, %c0_47, %c0_48, %c32] : memref<1x8x16x64xf32, #tpu.memory_space<vmem>>, vector<1x1x16x32xf32>
    %287 = vector.shape_cast %286 : vector<1x1x16x32xf32> to vector<16x32xf32>
    %288 = vector.shape_cast %285 : vector<16x32xf32> to vector<1x1x16x32xf32>
    tpu.vector_store %arg5[%c0_46, %c0_47, %c0_48, %c32], %288 {strides = array<i32>} : memref<1x8x16x64xf32, #tpu.memory_space<vmem>>, vector<1x1x16x32xf32>,
    %289 = vector.extract_strided_slice %8 {offsets = [1, 0, 1, 0], sizes = [1, 1, 1, 32], strides = [1, 1, 1, 1]} : vector<2x4x8x32xf32> to vector<1x1x1x32xf32>
    %290 = vector.shape_cast %289 : vector<1x1x1x32xf32> to vector<32xf32>
    %291 = vector.shape_cast %290 : vector<32xf32> to vector<1x32xf32>
    %292 = vector.broadcast %291 : vector<1x32xf32> to vector<16x32xf32>
    %293 = arith.mulf %1, %292 : vector<16x32xf32>
    %294 = vector.extract_strided_slice %8 {offsets = [1, 1, 1, 0], sizes = [1, 1, 1, 32], strides = [1, 1, 1, 1]} : vector<2x4x8x32xf32> to vector<1x1x1x32xf32>
    %295 = vector.shape_cast %294 : vector<1x1x1x32xf32> to vector<32xf32>
    %296 = vector.shape_cast %295 : vector<32xf32> to vector<1x32xf32>
    %297 = vector.broadcast %296 : vector<1x32xf32> to vector<16x32xf32>
    %298 = arith.mulf %3, %297 : vector<16x32xf32>
    %299 = arith.addf %293, %298 : vector<16x32xf32>
    %300 = vector.extract_strided_slice %8 {offsets = [1, 2, 1, 0], sizes = [1, 1, 1, 32], strides = [1, 1, 1, 1]} : vector<2x4x8x32xf32> to vector<1x1x1x32xf32>
    %301 = vector.shape_cast %300 : vector<1x1x1x32xf32> to vector<32xf32>
    %302 = vector.shape_cast %301 : vector<32xf32> to vector<1x32xf32>
    %303 = vector.broadcast %302 : vector<1x32xf32> to vector<16x32xf32>
    %304 = arith.mulf %5, %303 : vector<16x32xf32>
    %305 = arith.addf %299, %304 : vector<16x32xf32>
    %306 = vector.extract_strided_slice %8 {offsets = [1, 3, 1, 0], sizes = [1, 1, 1, 32], strides = [1, 1, 1, 1]} : vector<2x4x8x32xf32> to vector<1x1x1x32xf32>
    %307 = vector.shape_cast %306 : vector<1x1x1x32xf32> to vector<32xf32>
    %308 = vector.shape_cast %307 : vector<32xf32> to vector<1x32xf32>
    %309 = vector.broadcast %308 : vector<1x32xf32> to vector<16x32xf32>
    %310 = arith.mulf %7, %309 : vector<16x32xf32>
    %311 = arith.addf %305, %310 : vector<16x32xf32>
    %312 = vector.extract_strided_slice %9 {offsets = [1, 0], sizes = [1, 1], strides = [1, 1]} : vector<8x1xf32> to vector<1x1xf32>
    %313 = vector.shape_cast %312 : vector<1x1xf32> to vector<1xf32>
    %314 = vector.shape_cast %313 : vector<1xf32> to vector<1x1xf32>
    %315 = vector.broadcast %314 : vector<1x1xf32> to vector<16x32xf32>
    %316 = arith.addf %311, %315 : vector<16x32xf32>
    %c0_49 = arith.constant 0 : index
    %c1_50 = arith.constant 1 : index
    %c0_51 = arith.constant 0 : index
    %c32_52 = arith.constant 32 : index
    %317 = vector.load %arg5[%c0_49, %c1_50, %c0_51, %c32_52] : memref<1x8x16x64xf32, #tpu.memory_space<vmem>>, vector<1x1x16x32xf32>
    %318 = vector.shape_cast %317 : vector<1x1x16x32xf32> to vector<16x32xf32>
    %319 = vector.shape_cast %316 : vector<16x32xf32> to vector<1x1x16x32xf32>
    tpu.vector_store %arg5[%c0_49, %c1_50, %c0_51, %c32_52], %319 {strides = array<i32>} : memref<1x8x16x64xf32, #tpu.memory_space<vmem>>, vector<1x1x16x32xf32>,
    %320 = vector.extract_strided_slice %8 {offsets = [1, 0, 2, 0], sizes = [1, 1, 1, 32], strides = [1, 1, 1, 1]} : vector<2x4x8x32xf32> to vector<1x1x1x32xf32>
    %321 = vector.shape_cast %320 : vector<1x1x1x32xf32> to vector<32xf32>
    %322 = vector.shape_cast %321 : vector<32xf32> to vector<1x32xf32>
    %323 = vector.broadcast %322 : vector<1x32xf32> to vector<16x32xf32>
    %324 = arith.mulf %1, %323 : vector<16x32xf32>
    %325 = vector.extract_strided_slice %8 {offsets = [1, 1, 2, 0], sizes = [1, 1, 1, 32], strides = [1, 1, 1, 1]} : vector<2x4x8x32xf32> to vector<1x1x1x32xf32>
    %326 = vector.shape_cast %325 : vector<1x1x1x32xf32> to vector<32xf32>
    %327 = vector.shape_cast %326 : vector<32xf32> to vector<1x32xf32>
    %328 = vector.broadcast %327 : vector<1x32xf32> to vector<16x32xf32>
    %329 = arith.mulf %3, %328 : vector<16x32xf32>
    %330 = arith.addf %324, %329 : vector<16x32xf32>
    %331 = vector.extract_strided_slice %8 {offsets = [1, 2, 2, 0], sizes = [1, 1, 1, 32], strides = [1, 1, 1, 1]} : vector<2x4x8x32xf32> to vector<1x1x1x32xf32>
    %332 = vector.shape_cast %331 : vector<1x1x1x32xf32> to vector<32xf32>
    %333 = vector.shape_cast %332 : vector<32xf32> to vector<1x32xf32>
    %334 = vector.broadcast %333 : vector<1x32xf32> to vector<16x32xf32>
    %335 = arith.mulf %5, %334 : vector<16x32xf32>
    %336 = arith.addf %330, %335 : vector<16x32xf32>
    %337 = vector.extract_strided_slice %8 {offsets = [1, 3, 2, 0], sizes = [1, 1, 1, 32], strides = [1, 1, 1, 1]} : vector<2x4x8x32xf32> to vector<1x1x1x32xf32>
    %338 = vector.shape_cast %337 : vector<1x1x1x32xf32> to vector<32xf32>
    %339 = vector.shape_cast %338 : vector<32xf32> to vector<1x32xf32>
    %340 = vector.broadcast %339 : vector<1x32xf32> to vector<16x32xf32>
    %341 = arith.mulf %7, %340 : vector<16x32xf32>
    %342 = arith.addf %336, %341 : vector<16x32xf32>
    %343 = vector.extract_strided_slice %9 {offsets = [2, 0], sizes = [1, 1], strides = [1, 1]} : vector<8x1xf32> to vector<1x1xf32>
    %344 = vector.shape_cast %343 : vector<1x1xf32> to vector<1xf32>
    %345 = vector.shape_cast %344 : vector<1xf32> to vector<1x1xf32>
    %346 = vector.broadcast %345 : vector<1x1xf32> to vector<16x32xf32>
    %347 = arith.addf %342, %346 : vector<16x32xf32>
    %c0_53 = arith.constant 0 : index
    %c2_54 = arith.constant 2 : index
    %c0_55 = arith.constant 0 : index
    %c32_56 = arith.constant 32 : index
    %348 = vector.load %arg5[%c0_53, %c2_54, %c0_55, %c32_56] : memref<1x8x16x64xf32, #tpu.memory_space<vmem>>, vector<1x1x16x32xf32>
    %349 = vector.shape_cast %348 : vector<1x1x16x32xf32> to vector<16x32xf32>
    %350 = vector.shape_cast %347 : vector<16x32xf32> to vector<1x1x16x32xf32>
    tpu.vector_store %arg5[%c0_53, %c2_54, %c0_55, %c32_56], %350 {strides = array<i32>} : memref<1x8x16x64xf32, #tpu.memory_space<vmem>>, vector<1x1x16x32xf32>,
    %351 = vector.extract_strided_slice %8 {offsets = [1, 0, 3, 0], sizes = [1, 1, 1, 32], strides = [1, 1, 1, 1]} : vector<2x4x8x32xf32> to vector<1x1x1x32xf32>
    %352 = vector.shape_cast %351 : vector<1x1x1x32xf32> to vector<32xf32>
    %353 = vector.shape_cast %352 : vector<32xf32> to vector<1x32xf32>
    %354 = vector.broadcast %353 : vector<1x32xf32> to vector<16x32xf32>
    %355 = arith.mulf %1, %354 : vector<16x32xf32>
    %356 = vector.extract_strided_slice %8 {offsets = [1, 1, 3, 0], sizes = [1, 1, 1, 32], strides = [1, 1, 1, 1]} : vector<2x4x8x32xf32> to vector<1x1x1x32xf32>
    %357 = vector.shape_cast %356 : vector<1x1x1x32xf32> to vector<32xf32>
    %358 = vector.shape_cast %357 : vector<32xf32> to vector<1x32xf32>
    %359 = vector.broadcast %358 : vector<1x32xf32> to vector<16x32xf32>
    %360 = arith.mulf %3, %359 : vector<16x32xf32>
    %361 = arith.addf %355, %360 : vector<16x32xf32>
    %362 = vector.extract_strided_slice %8 {offsets = [1, 2, 3, 0], sizes = [1, 1, 1, 32], strides = [1, 1, 1, 1]} : vector<2x4x8x32xf32> to vector<1x1x1x32xf32>
    %363 = vector.shape_cast %362 : vector<1x1x1x32xf32> to vector<32xf32>
    %364 = vector.shape_cast %363 : vector<32xf32> to vector<1x32xf32>
    %365 = vector.broadcast %364 : vector<1x32xf32> to vector<16x32xf32>
    %366 = arith.mulf %5, %365 : vector<16x32xf32>
    %367 = arith.addf %361, %366 : vector<16x32xf32>
    %368 = vector.extract_strided_slice %8 {offsets = [1, 3, 3, 0], sizes = [1, 1, 1, 32], strides = [1, 1, 1, 1]} : vector<2x4x8x32xf32> to vector<1x1x1x32xf32>
    %369 = vector.shape_cast %368 : vector<1x1x1x32xf32> to vector<32xf32>
    %370 = vector.shape_cast %369 : vector<32xf32> to vector<1x32xf32>
    %371 = vector.broadcast %370 : vector<1x32xf32> to vector<16x32xf32>
    %372 = arith.mulf %7, %371 : vector<16x32xf32>
    %373 = arith.addf %367, %372 : vector<16x32xf32>
    %374 = vector.extract_strided_slice %9 {offsets = [3, 0], sizes = [1, 1], strides = [1, 1]} : vector<8x1xf32> to vector<1x1xf32>
    %375 = vector.shape_cast %374 : vector<1x1xf32> to vector<1xf32>
    %376 = vector.shape_cast %375 : vector<1xf32> to vector<1x1xf32>
    %377 = vector.broadcast %376 : vector<1x1xf32> to vector<16x32xf32>
    %378 = arith.addf %373, %377 : vector<16x32xf32>
    %c0_57 = arith.constant 0 : index
    %c3_58 = arith.constant 3 : index
    %c0_59 = arith.constant 0 : index
    %c32_60 = arith.constant 32 : index
    %379 = vector.load %arg5[%c0_57, %c3_58, %c0_59, %c32_60] : memref<1x8x16x64xf32, #tpu.memory_space<vmem>>, vector<1x1x16x32xf32>
    %380 = vector.shape_cast %379 : vector<1x1x16x32xf32> to vector<16x32xf32>
    %381 = vector.shape_cast %378 : vector<16x32xf32> to vector<1x1x16x32xf32>
    tpu.vector_store %arg5[%c0_57, %c3_58, %c0_59, %c32_60], %381 {strides = array<i32>} : memref<1x8x16x64xf32, #tpu.memory_space<vmem>>, vector<1x1x16x32xf32>,
    %382 = vector.extract_strided_slice %8 {offsets = [1, 0, 4, 0], sizes = [1, 1, 1, 32], strides = [1, 1, 1, 1]} : vector<2x4x8x32xf32> to vector<1x1x1x32xf32>
    %383 = vector.shape_cast %382 : vector<1x1x1x32xf32> to vector<32xf32>
    %384 = vector.shape_cast %383 : vector<32xf32> to vector<1x32xf32>
    %385 = vector.broadcast %384 : vector<1x32xf32> to vector<16x32xf32>
    %386 = arith.mulf %1, %385 : vector<16x32xf32>
    %387 = vector.extract_strided_slice %8 {offsets = [1, 1, 4, 0], sizes = [1, 1, 1, 32], strides = [1, 1, 1, 1]} : vector<2x4x8x32xf32> to vector<1x1x1x32xf32>
    %388 = vector.shape_cast %387 : vector<1x1x1x32xf32> to vector<32xf32>
    %389 = vector.shape_cast %388 : vector<32xf32> to vector<1x32xf32>
    %390 = vector.broadcast %389 : vector<1x32xf32> to vector<16x32xf32>
    %391 = arith.mulf %3, %390 : vector<16x32xf32>
    %392 = arith.addf %386, %391 : vector<16x32xf32>
    %393 = vector.extract_strided_slice %8 {offsets = [1, 2, 4, 0], sizes = [1, 1, 1, 32], strides = [1, 1, 1, 1]} : vector<2x4x8x32xf32> to vector<1x1x1x32xf32>
    %394 = vector.shape_cast %393 : vector<1x1x1x32xf32> to vector<32xf32>
    %395 = vector.shape_cast %394 : vector<32xf32> to vector<1x32xf32>
    %396 = vector.broadcast %395 : vector<1x32xf32> to vector<16x32xf32>
    %397 = arith.mulf %5, %396 : vector<16x32xf32>
    %398 = arith.addf %392, %397 : vector<16x32xf32>
    %399 = vector.extract_strided_slice %8 {offsets = [1, 3, 4, 0], sizes = [1, 1, 1, 32], strides = [1, 1, 1, 1]} : vector<2x4x8x32xf32> to vector<1x1x1x32xf32>
    %400 = vector.shape_cast %399 : vector<1x1x1x32xf32> to vector<32xf32>
    %401 = vector.shape_cast %400 : vector<32xf32> to vector<1x32xf32>
    %402 = vector.broadcast %401 : vector<1x32xf32> to vector<16x32xf32>
    %403 = arith.mulf %7, %402 : vector<16x32xf32>
    %404 = arith.addf %398, %403 : vector<16x32xf32>
    %405 = vector.extract_strided_slice %9 {offsets = [4, 0], sizes = [1, 1], strides = [1, 1]} : vector<8x1xf32> to vector<1x1xf32>
    %406 = vector.shape_cast %405 : vector<1x1xf32> to vector<1xf32>
    %407 = vector.shape_cast %406 : vector<1xf32> to vector<1x1xf32>
    %408 = vector.broadcast %407 : vector<1x1xf32> to vector<16x32xf32>
    %409 = arith.addf %404, %408 : vector<16x32xf32>
    %c0_61 = arith.constant 0 : index
    %c4_62 = arith.constant 4 : index
    %c0_63 = arith.constant 0 : index
    %c32_64 = arith.constant 32 : index
    %410 = vector.load %arg5[%c0_61, %c4_62, %c0_63, %c32_64] : memref<1x8x16x64xf32, #tpu.memory_space<vmem>>, vector<1x1x16x32xf32>
    %411 = vector.shape_cast %410 : vector<1x1x16x32xf32> to vector<16x32xf32>
    %412 = vector.shape_cast %409 : vector<16x32xf32> to vector<1x1x16x32xf32>
    tpu.vector_store %arg5[%c0_61, %c4_62, %c0_63, %c32_64], %412 {strides = array<i32>} : memref<1x8x16x64xf32, #tpu.memory_space<vmem>>, vector<1x1x16x32xf32>,
    %413 = vector.extract_strided_slice %8 {offsets = [1, 0, 5, 0], sizes = [1, 1, 1, 32], strides = [1, 1, 1, 1]} : vector<2x4x8x32xf32> to vector<1x1x1x32xf32>
    %414 = vector.shape_cast %413 : vector<1x1x1x32xf32> to vector<32xf32>
    %415 = vector.shape_cast %414 : vector<32xf32> to vector<1x32xf32>
    %416 = vector.broadcast %415 : vector<1x32xf32> to vector<16x32xf32>
    %417 = arith.mulf %1, %416 : vector<16x32xf32>
    %418 = vector.extract_strided_slice %8 {offsets = [1, 1, 5, 0], sizes = [1, 1, 1, 32], strides = [1, 1, 1, 1]} : vector<2x4x8x32xf32> to vector<1x1x1x32xf32>
    %419 = vector.shape_cast %418 : vector<1x1x1x32xf32> to vector<32xf32>
    %420 = vector.shape_cast %419 : vector<32xf32> to vector<1x32xf32>
    %421 = vector.broadcast %420 : vector<1x32xf32> to vector<16x32xf32>
    %422 = arith.mulf %3, %421 : vector<16x32xf32>
    %423 = arith.addf %417, %422 : vector<16x32xf32>
    %424 = vector.extract_strided_slice %8 {offsets = [1, 2, 5, 0], sizes = [1, 1, 1, 32], strides = [1, 1, 1, 1]} : vector<2x4x8x32xf32> to vector<1x1x1x32xf32>
    %425 = vector.shape_cast %424 : vector<1x1x1x32xf32> to vector<32xf32>
    %426 = vector.shape_cast %425 : vector<32xf32> to vector<1x32xf32>
    %427 = vector.broadcast %426 : vector<1x32xf32> to vector<16x32xf32>
    %428 = arith.mulf %5, %427 : vector<16x32xf32>
    %429 = arith.addf %423, %428 : vector<16x32xf32>
    %430 = vector.extract_strided_slice %8 {offsets = [1, 3, 5, 0], sizes = [1, 1, 1, 32], strides = [1, 1, 1, 1]} : vector<2x4x8x32xf32> to vector<1x1x1x32xf32>
    %431 = vector.shape_cast %430 : vector<1x1x1x32xf32> to vector<32xf32>
    %432 = vector.shape_cast %431 : vector<32xf32> to vector<1x32xf32>
    %433 = vector.broadcast %432 : vector<1x32xf32> to vector<16x32xf32>
    %434 = arith.mulf %7, %433 : vector<16x32xf32>
    %435 = arith.addf %429, %434 : vector<16x32xf32>
    %436 = vector.extract_strided_slice %9 {offsets = [5, 0], sizes = [1, 1], strides = [1, 1]} : vector<8x1xf32> to vector<1x1xf32>
    %437 = vector.shape_cast %436 : vector<1x1xf32> to vector<1xf32>
    %438 = vector.shape_cast %437 : vector<1xf32> to vector<1x1xf32>
    %439 = vector.broadcast %438 : vector<1x1xf32> to vector<16x32xf32>
    %440 = arith.addf %435, %439 : vector<16x32xf32>
    %c0_65 = arith.constant 0 : index
    %c5_66 = arith.constant 5 : index
    %c0_67 = arith.constant 0 : index
    %c32_68 = arith.constant 32 : index
    %441 = vector.load %arg5[%c0_65, %c5_66, %c0_67, %c32_68] : memref<1x8x16x64xf32, #tpu.memory_space<vmem>>, vector<1x1x16x32xf32>
    %442 = vector.shape_cast %441 : vector<1x1x16x32xf32> to vector<16x32xf32>
    %443 = vector.shape_cast %440 : vector<16x32xf32> to vector<1x1x16x32xf32>
    tpu.vector_store %arg5[%c0_65, %c5_66, %c0_67, %c32_68], %443 {strides = array<i32>} : memref<1x8x16x64xf32, #tpu.memory_space<vmem>>, vector<1x1x16x32xf32>,
    %444 = vector.extract_strided_slice %8 {offsets = [1, 0, 6, 0], sizes = [1, 1, 1, 32], strides = [1, 1, 1, 1]} : vector<2x4x8x32xf32> to vector<1x1x1x32xf32>
    %445 = vector.shape_cast %444 : vector<1x1x1x32xf32> to vector<32xf32>
    %446 = vector.shape_cast %445 : vector<32xf32> to vector<1x32xf32>
    %447 = vector.broadcast %446 : vector<1x32xf32> to vector<16x32xf32>
    %448 = arith.mulf %1, %447 : vector<16x32xf32>
    %449 = vector.extract_strided_slice %8 {offsets = [1, 1, 6, 0], sizes = [1, 1, 1, 32], strides = [1, 1, 1, 1]} : vector<2x4x8x32xf32> to vector<1x1x1x32xf32>
    %450 = vector.shape_cast %449 : vector<1x1x1x32xf32> to vector<32xf32>
    %451 = vector.shape_cast %450 : vector<32xf32> to vector<1x32xf32>
    %452 = vector.broadcast %451 : vector<1x32xf32> to vector<16x32xf32>
    %453 = arith.mulf %3, %452 : vector<16x32xf32>
    %454 = arith.addf %448, %453 : vector<16x32xf32>
    %455 = vector.extract_strided_slice %8 {offsets = [1, 2, 6, 0], sizes = [1, 1, 1, 32], strides = [1, 1, 1, 1]} : vector<2x4x8x32xf32> to vector<1x1x1x32xf32>
    %456 = vector.shape_cast %455 : vector<1x1x1x32xf32> to vector<32xf32>
    %457 = vector.shape_cast %456 : vector<32xf32> to vector<1x32xf32>
    %458 = vector.broadcast %457 : vector<1x32xf32> to vector<16x32xf32>
    %459 = arith.mulf %5, %458 : vector<16x32xf32>
    %460 = arith.addf %454, %459 : vector<16x32xf32>
    %461 = vector.extract_strided_slice %8 {offsets = [1, 3, 6, 0], sizes = [1, 1, 1, 32], strides = [1, 1, 1, 1]} : vector<2x4x8x32xf32> to vector<1x1x1x32xf32>
    %462 = vector.shape_cast %461 : vector<1x1x1x32xf32> to vector<32xf32>
    %463 = vector.shape_cast %462 : vector<32xf32> to vector<1x32xf32>
    %464 = vector.broadcast %463 : vector<1x32xf32> to vector<16x32xf32>
    %465 = arith.mulf %7, %464 : vector<16x32xf32>
    %466 = arith.addf %460, %465 : vector<16x32xf32>
    %467 = vector.extract_strided_slice %9 {offsets = [6, 0], sizes = [1, 1], strides = [1, 1]} : vector<8x1xf32> to vector<1x1xf32>
    %468 = vector.shape_cast %467 : vector<1x1xf32> to vector<1xf32>
    %469 = vector.shape_cast %468 : vector<1xf32> to vector<1x1xf32>
    %470 = vector.broadcast %469 : vector<1x1xf32> to vector<16x32xf32>
    %471 = arith.addf %466, %470 : vector<16x32xf32>
    %c0_69 = arith.constant 0 : index
    %c6_70 = arith.constant 6 : index
    %c0_71 = arith.constant 0 : index
    %c32_72 = arith.constant 32 : index
    %472 = vector.load %arg5[%c0_69, %c6_70, %c0_71, %c32_72] : memref<1x8x16x64xf32, #tpu.memory_space<vmem>>, vector<1x1x16x32xf32>
    %473 = vector.shape_cast %472 : vector<1x1x16x32xf32> to vector<16x32xf32>
    %474 = vector.shape_cast %471 : vector<16x32xf32> to vector<1x1x16x32xf32>
    tpu.vector_store %arg5[%c0_69, %c6_70, %c0_71, %c32_72], %474 {strides = array<i32>} : memref<1x8x16x64xf32, #tpu.memory_space<vmem>>, vector<1x1x16x32xf32>,
    %475 = vector.extract_strided_slice %8 {offsets = [1, 0, 7, 0], sizes = [1, 1, 1, 32], strides = [1, 1, 1, 1]} : vector<2x4x8x32xf32> to vector<1x1x1x32xf32>
    %476 = vector.shape_cast %475 : vector<1x1x1x32xf32> to vector<32xf32>
    %477 = vector.shape_cast %476 : vector<32xf32> to vector<1x32xf32>
    %478 = vector.broadcast %477 : vector<1x32xf32> to vector<16x32xf32>
    %479 = arith.mulf %1, %478 : vector<16x32xf32>
    %480 = vector.extract_strided_slice %8 {offsets = [1, 1, 7, 0], sizes = [1, 1, 1, 32], strides = [1, 1, 1, 1]} : vector<2x4x8x32xf32> to vector<1x1x1x32xf32>
    %481 = vector.shape_cast %480 : vector<1x1x1x32xf32> to vector<32xf32>
    %482 = vector.shape_cast %481 : vector<32xf32> to vector<1x32xf32>
    %483 = vector.broadcast %482 : vector<1x32xf32> to vector<16x32xf32>
    %484 = arith.mulf %3, %483 : vector<16x32xf32>
    %485 = arith.addf %479, %484 : vector<16x32xf32>
    %486 = vector.extract_strided_slice %8 {offsets = [1, 2, 7, 0], sizes = [1, 1, 1, 32], strides = [1, 1, 1, 1]} : vector<2x4x8x32xf32> to vector<1x1x1x32xf32>
    %487 = vector.shape_cast %486 : vector<1x1x1x32xf32> to vector<32xf32>
    %488 = vector.shape_cast %487 : vector<32xf32> to vector<1x32xf32>
    %489 = vector.broadcast %488 : vector<1x32xf32> to vector<16x32xf32>
    %490 = arith.mulf %5, %489 : vector<16x32xf32>
    %491 = arith.addf %485, %490 : vector<16x32xf32>
    %492 = vector.extract_strided_slice %8 {offsets = [1, 3, 7, 0], sizes = [1, 1, 1, 32], strides = [1, 1, 1, 1]} : vector<2x4x8x32xf32> to vector<1x1x1x32xf32>
    %493 = vector.shape_cast %492 : vector<1x1x1x32xf32> to vector<32xf32>
    %494 = vector.shape_cast %493 : vector<32xf32> to vector<1x32xf32>
    %495 = vector.broadcast %494 : vector<1x32xf32> to vector<16x32xf32>
    %496 = arith.mulf %7, %495 : vector<16x32xf32>
    %497 = arith.addf %491, %496 : vector<16x32xf32>
    %498 = vector.extract_strided_slice %9 {offsets = [7, 0], sizes = [1, 1], strides = [1, 1]} : vector<8x1xf32> to vector<1x1xf32>
    %499 = vector.shape_cast %498 : vector<1x1xf32> to vector<1xf32>
    %500 = vector.shape_cast %499 : vector<1xf32> to vector<1x1xf32>
    %501 = vector.broadcast %500 : vector<1x1xf32> to vector<16x32xf32>
    %502 = arith.addf %497, %501 : vector<16x32xf32>
    %c0_73 = arith.constant 0 : index
    %c7_74 = arith.constant 7 : index
    %c0_75 = arith.constant 0 : index
    %c32_76 = arith.constant 32 : index
    %503 = vector.load %arg5[%c0_73, %c7_74, %c0_75, %c32_76] : memref<1x8x16x64xf32, #tpu.memory_space<vmem>>, vector<1x1x16x32xf32>
    %504 = vector.shape_cast %503 : vector<1x1x16x32xf32> to vector<16x32xf32>
    %505 = vector.shape_cast %502 : vector<16x32xf32> to vector<1x1x16x32xf32>
    tpu.vector_store %arg5[%c0_73, %c7_74, %c0_75, %c32_76], %505 {strides = array<i32>} : memref<1x8x16x64xf32, #tpu.memory_space<vmem>>, vector<1x1x16x32xf32>,
    return
  }
  func.func @transform_0(%arg0: i32, %arg1: i32) -> (i32, i32, i32, i32) {
    %c0_i32 = arith.constant 0 : i32
    %c0_i32_0 = arith.constant 0 : i32
    %c0_i32_1 = arith.constant 0 : i32
    return %arg0, %c0_i32, %arg1, %c0_i32_0 : i32, i32, i32, i32
  }
  func.func @transform_1(%arg0: i32, %arg1: i32) -> (i32, i32, i32, i32) {
    %c0_i32 = arith.constant 0 : i32
    %c0_i32_0 = arith.constant 0 : i32
    %c0_i32_1 = arith.constant 0 : i32
    %c0_i32_2 = arith.constant 0 : i32
    %c0_i32_3 = arith.constant 0 : i32
    return %c0_i32, %c0_i32_0, %c0_i32_1, %c0_i32_2 : i32, i32, i32, i32
  }
  func.func @transform_2(%arg0: i32, %arg1: i32) -> (i32, i32) {
    %c0_i32 = arith.constant 0 : i32
    %c0_i32_0 = arith.constant 0 : i32
    %c0_i32_1 = arith.constant 0 : i32
    return %c0_i32, %c0_i32_0 : i32, i32
  }
  func.func @transform_3(%arg0: i32, %arg1: i32) -> (i32, i32, i32, i32) {
    %c0_i32 = arith.constant 0 : i32
    %c0_i32_0 = arith.constant 0 : i32
    %c0_i32_1 = arith.constant 0 : i32
    return %arg0, %c0_i32, %arg1, %c0_i32_0 : i32, i32, i32, i32
  }
}

</mosaic_0001>

<llo_original>
// kernel: tpu_custom_call.1
$region0: #{tpu_custom_call.1}
  #allocation0 [shape = 'u32[]', space=smem, size = 0x4, offset = 0x4, fixed_abs, tag = 'smem constant byte address 0x4 - core index']
  #allocation1 [shape = 'u32[144,128]{1,0:T(1,128)}', space=vmem, size = 0x12000, scoped, tag = 'internal scratch']
  %s0 = inlined_call_operand.hbm [shape: f32[2,4,16,32], index: 0, kind: input, shape index: {}]
  %s1 = inlined_call_operand.hbm [shape: f32[2,4,8,32], index: 1, kind: input, shape index: {}]
  %s2 = inlined_call_operand.vmem [shape: f32[8,1], index: 2, kind: input, shape index: {}]
  %s3 = inlined_call_operand.hbm [shape: f32[2,8,16,64], index: 3, kind: output, shape index: {}]
  %s4 = sld [smem:[#allocation0]]
  $region53: #{tpu_custom_call.1} parent=0
    _
  %s6 = ssub.s32 1, %s4
  %s7 = scalar_select 0, %s6, %s4
  $region1: #{tpu_custom_call.1} parent=0
    #allocation2 [shape = 'u8[65536]{0}', space=vmem, size = 0x10000, scoped, tag = 'input window, operand 0']
    #allocation3 [shape = 's32[2]{0}', space=sflag, size = 0x8, scoped, tag = 'scoped memory for tpu_custom_call.1']
    #allocation4 [shape = 's32[2]{0}', space=sflag, size = 0x8, scoped, tag = 'scoped memory for tpu_custom_call.1']
    #allocation5 [shape = 'u8[32768]{0}', space=vmem, size = 0x8000, scoped, tag = 'input window, operand 1, single buffered']
    #allocation6 [shape = 's32[1]{0}', space=sflag, size = 0x4, scoped, tag = 'scoped memory for tpu_custom_call.1']
    #allocation7 [shape = 'u8[131072]{0}', space=vmem, size = 0x20000, scoped, tag = 'output window, operand 0']
    %8 = vsyncpa [#allocation3], 0
    %s9 = scalar_lea.sflag [#allocation3], 1
    %10 = vsyncpa %s9, 0
    %11 = vsyncpa [#allocation6], 0
    %12 = vsyncpa [#allocation4], 0
    %s13 = scalar_lea.sflag [#allocation4], 1
    %14 = vsyncpa %s13, 0
    loop: start=0, step=1, limit=4
    $region2: #{tpu_custom_call.1} parent=1 // loop_pre_header
      _
    $region3: #{tpu_custom_call.1} parent=1 // loop_header
      %s16 = sphi 0, %s20
      %p17 = scmp.ge.s32.totalorder %s16, 4
      %s23 = sphi 0, %s35
      %s24 = sphi 0, %s31
      %s25 = sphi 0, %s23
      %s26 = sphi 0, %s24
      %s27 = sphi 0, %s25
      %s28 = sphi 0, %s26
      %s40 = sphi 0, %s42
      %s43 = sphi 0, %s40
      %s44 = sphi 0, %s43
      %s60 = sphi 0, %s44
      %s64 = sphi 0, %s64
      %s66 = sphi 0, %s64
      %s67 = sphi 0, %s66
      %s81 = sphi 0, %s67
      %s85 = sphi 0, %s85
      %s87 = sphi 0, %s85
      %s88 = sphi 0, %s87
      %s102 = sphi 0, %s88
      %s110 = sphi 0, %s112
      %s113 = sphi 0, %s110
      %s114 = sphi 0, %s113
      %s130 = sphi 0, %s114
    $region4: #{tpu_custom_call.1} parent=1 // loop_header_branch
      %19 = sbr.rel (%p17) target = $region8
    $region5: #{tpu_custom_call.1} parent=1 // loop_body
      %s21 = ssub.s32 %s16, 1
      %s22 = ssub.s32 %s16, 2
      %s29 = sadd.s32 1, %s24
      %p30 = scmp.ge.s32.totalorder %s29, 1
      %s31 = scalar_select %p30, 0, %s29
      %s32 = sadd.s32 1, %s23
      %s33 = scalar_select %p30, %s32, %s23
      %p34 = scmp.ge.s32.totalorder %s33, 2
      %s35 = scalar_select %p34, 0, %s33
      %s36 = ssub.s32 %s23, %s35
      %s37 = ssub.s32 %s24, %s31
      %s38 = sor.u32 %s36, %s37
      %p39 = scmp.eq.s32.totalorder %s38, 0
      %s41 = sadd.s32 %s40, 1
      %s42 = scalar_select %p39, %s40, %s41
      %p45 = pneg %p39
      %p46 = scmp.eq.s32.totalorder %s16, 1
      %p47 = por %p45, %p46
      %p48 = scmp.ne.s32.totalorder %s40, %s43
      %p49 = scmp.eq.s32.totalorder %s16, 0
      %p50 = por %p48, %p49
      %p51 = scmp.ne.s32.totalorder %s40, %s43
      %p52 = scmp.eq.s32.totalorder %s21, 1
      %p53 = por %p51, %p52
      %p54 = scmp.ne.s32.totalorder %s43, %s44
      %p55 = scmp.eq.s32.totalorder %s21, 0
      %p56 = por %p54, %p55
      %p57 = scmp.ne.s32.totalorder %s43, %s44
      %p58 = scmp.eq.s32.totalorder %s22, 1
      %p59 = por %p57, %p58
      %p61 = scmp.ne.s32.totalorder %s44, %s60
      %p62 = scmp.eq.s32.totalorder %s22, 0
      %p63 = por %p61, %p62
      %s65 = sadd.s32 %s64, 1
      %p68 = scmp.eq.s32.totalorder %s16, 1
      %p69 = scmp.ne.s32.totalorder %s64, %s66
      %p70 = scmp.eq.s32.totalorder %s16, 0
      %p71 = por %p69, %p70
      %p72 = scmp.ne.s32.totalorder %s64, %s66
      %p73 = scmp.eq.s32.totalorder %s21, 1
      %p74 = por %p72, %p73
      %p75 = scmp.ne.s32.totalorder %s66, %s67
      %p76 = scmp.eq.s32.totalorder %s21, 0
      %p77 = por %p75, %p76
      %p78 = scmp.ne.s32.totalorder %s66, %s67
      %p79 = scmp.eq.s32.totalorder %s22, 1
      %p80 = por %p78, %p79
      %p82 = scmp.ne.s32.totalorder %s67, %s81
      %p83 = scmp.eq.s32.totalorder %s22, 0
      %p84 = por %p82, %p83
      %s86 = sadd.s32 %s85, 1
      %p89 = scmp.eq.s32.totalorder %s16, 1
      %p90 = scmp.ne.s32.totalorder %s85, %s87
      %p91 = scmp.eq.s32.totalorder %s16, 0
      %p92 = por %p90, %p91
      %p93 = scmp.ne.s32.totalorder %s85, %s87
      %p94 = scmp.eq.s32.totalorder %s21, 1
      %p95 = por %p93, %p94
      %p96 = scmp.ne.s32.totalorder %s87, %s88
      %p97 = scmp.eq.s32.totalorder %s21, 0
      %p98 = por %p96, %p97
      %p99 = scmp.ne.s32.totalorder %s87, %s88
      %p100 = scmp.eq.s32.totalorder %s22, 1
      %p101 = por %p99, %p100
      %p103 = scmp.ne.s32.totalorder %s88, %s102
      %p104 = scmp.eq.s32.totalorder %s22, 0
      %p105 = por %p103, %p104
      %s106 = ssub.s32 %s23, %s35
      %s107 = ssub.s32 %s24, %s31
      %s108 = sor.u32 %s106, %s107
      %p109 = scmp.eq.s32.totalorder %s108, 0
      %s111 = sadd.s32 %s110, 1
      %s112 = scalar_select %p109, %s110, %s111
      %p115 = pneg %p109
      %p116 = scmp.eq.s32.totalorder %s16, 1
      %p117 = por %p115, %p116
      %p118 = scmp.ne.s32.totalorder %s110, %s113
      %p119 = scmp.eq.s32.totalorder %s16, 0
      %p120 = por %p118, %p119
      %p121 = scmp.ne.s32.totalorder %s110, %s113
      %p122 = scmp.eq.s32.totalorder %s21, 1
      %p123 = por %p121, %p122
      %p124 = scmp.ne.s32.totalorder %s113, %s114
      %p125 = scmp.eq.s32.totalorder %s21, 0
      %p126 = por %p124, %p125
      %p127 = scmp.ne.s32.totalorder %s113, %s114
      %p128 = scmp.eq.s32.totalorder %s22, 1
      %p129 = por %p127, %p128
      %p131 = scmp.ne.s32.totalorder %s114, %s130
      %p132 = scmp.eq.s32.totalorder %s22, 0
      %p133 = por %p131, %p132
      %p134 = scmp.le.s32.totalorder 1, %s16
      %p135 = scmp.lt.s32.totalorder %s16, 3
      %p136 = pnand %p134, %p135
      %p137 = pneg %p136
      // Predicated region
      $region9: #{tpu_custom_call.1} parent=5 // pred_check
        _
      $region10: #{tpu_custom_call.1} parent=5 // pred_check_branch
        %139 = sbr.rel (%p136) target = $region12
      $region11: #{tpu_custom_call.1} parent=5 // pred_region
        %s140 = ssub.s32 %s16, 1
        // Predicated region
        $region13: #{tpu_custom_call.1} parent=11 // pred_check
          %p141 = pneg %p77
        $region14: #{tpu_custom_call.1} parent=11 // pred_check_branch
          %143 = sbr.rel (%p141) target = $region16
        $region15: #{tpu_custom_call.1} parent=11 // pred_region
          %s145 = ssub.s32 1024, 1024
          %146 = vsyncadd [#allocation6], %s145
          %s147 = sshll.u32 [#allocation5], 4
          %s148 = int_to_ptr.vmem [resolvable:$true] %s147
          %153 = dma.hbm_to_vmem [thread:$0]  %s1, 1024, %s148, [#allocation6], 128, 128, 8
        $region16: #{tpu_custom_call.1} parent=11 // pred_fallthru
          _
        // Predicated region
        $region17: #{tpu_custom_call.1} parent=11 // pred_check
          %p154 = pneg %p98
        $region18: #{tpu_custom_call.1} parent=11 // pred_check_branch
          %156 = sbr.rel (%p154) target = $region20
        $region19: #{tpu_custom_call.1} parent=11 // pred_region
          _
        $region20: #{tpu_custom_call.1} parent=11 // pred_fallthru
          _
      $region12: #{tpu_custom_call.1} parent=5 // pred_fallthru
        _
      %p157 = scmp.lt.s32.totalorder %s16, 2
      // Predicated region
      $region21: #{tpu_custom_call.1} parent=5 // pred_check
        %p158 = pneg %p157
      $region22: #{tpu_custom_call.1} parent=5 // pred_check_branch
        %160 = sbr.rel (%p158) target = $region24
      $region23: #{tpu_custom_call.1} parent=5 // pred_region
        // Predicated region
        $region25: #{tpu_custom_call.1} parent=23 // pred_check
          %p161 = pneg %p50
        $region26: #{tpu_custom_call.1} parent=23 // pred_check_branch
          %163 = sbr.rel (%p161) target = $region28
        $region27: #{tpu_custom_call.1} parent=23 // pred_region
          %s164 = sand.u32 %s40, 1
          %s165 = scalar_lea.sflag [#allocation3], %s164
          %s166 = sand.u32 %s40, 1
          %s167 = smul.addr %s166, 64
          %s168 = scalar_lea.vmem [#allocation2], %s167
          %s169 = smul.u32 2, %s24
          %s171 = ssub.s32 1024, 1024
          %172 = vsyncadd %s165, %s171
          %s173 = smul.addr %s23, 8
          %s174 = sadd.s32 %s169, %s173
          %s175 = smul.addr %s174, 128
          %s176 = scalar_lea.hbm %s0, %s175
          %s177 = sshll.u32 %s168, 4
          %s178 = int_to_ptr.vmem [resolvable:$true] %s177
          %183 = dma.hbm_to_vmem [thread:$0]  %s176, 1024, %s178, %s165, 128, 128, 8
        $region28: #{tpu_custom_call.1} parent=23 // pred_fallthru
          _
      $region24: #{tpu_custom_call.1} parent=5 // pred_fallthru
        _
      %p184 = scmp.le.s32.totalorder 1, %s16
      %p185 = scmp.lt.s32.totalorder %s16, 3
      %p186 = pnand %p184, %p185
      %p187 = pneg %p186
      // Predicated region
      $region29: #{tpu_custom_call.1} parent=5 // pred_check
        _
      $region30: #{tpu_custom_call.1} parent=5 // pred_check_branch
        %189 = sbr.rel (%p186) target = $region32
      $region31: #{tpu_custom_call.1} parent=5 // pred_region
        %s190 = ssub.s32 %s16, 1
        %s191 = sand.u32 %s43, 1
        %s192 = scalar_lea.sflag [#allocation3], %s191
        %s193 = sand.u32 %s43, 1
        %s194 = smul.addr %s193, 64
        %s195 = scalar_lea.vmem [#allocation2], %s194
        // Predicated region
        $region33: #{tpu_custom_call.1} parent=31 // pred_check
          %p196 = pneg %p56
        $region34: #{tpu_custom_call.1} parent=31 // pred_check_branch
          %198 = sbr.rel (%p196) target = $region36
        $region35: #{tpu_custom_call.1} parent=31 // pred_region
          %199 = dma.done %s192, 1024
        $region36: #{tpu_custom_call.1} parent=31 // pred_fallthru
          _
        // Predicated region
        $region37: #{tpu_custom_call.1} parent=31 // pred_check
          %p200 = pneg %p77
        $region38: #{tpu_custom_call.1} parent=31 // pred_check_branch
          %202 = sbr.rel (%p200) target = $region40
        $region39: #{tpu_custom_call.1} parent=31 // pred_region
          %203 = dma.done [#allocation6], 1024
        $region40: #{tpu_custom_call.1} parent=31 // pred_fallthru
          _
        %s204 = sand.u32 %s43, 1
        %s205 = scalar_lea.sflag [#allocation3], %s204
        %s206 = sand.u32 %s43, 1
        %s207 = smul.addr %s206, 64
        %s208 = scalar_lea.vmem [#allocation2], %s207
        %p209 = pneg %p56
        %p210 = pneg %p53
        %p211 = pneg %p77
        %p212 = pneg %p74
        %p213 = pneg %p98
        %p214 = pneg %p95
        %p215 = pneg %p126
        %p216 = pneg %p123
        %s217 = sand.u32 %s113, 1
        %s218 = scalar_lea.sflag [#allocation4], %s217
        %s219 = sand.u32 %s113, 1
        %s220 = smul.addr %s219, 128
        %s221 = scalar_lea.vmem [#allocation7], %s220
        %s222 = smul.u32 2, %s26
        %s223 = smul.u32 2, %s26
        %v224 = vld [vmem:[%s195] sm:$0xff]
        %v225 = vld [vmem:[%s195 + $0x8] sm:$0xff]
        %s226 = scalar_lea.vmem %s195, 16 [#allocation2]
        %v227 = vld [vmem:[%s226] sm:$0xff]
        %v228 = vld [vmem:[%s226 + $0x8] sm:$0xff]
        %s229 = scalar_lea.vmem %s195, 32 [#allocation2]
        %v230 = vld [vmem:[%s229] sm:$0xff]
        %v231 = vld [vmem:[%s229 + $0x8] sm:$0xff]
        %s232 = scalar_lea.vmem %s195, 48 [#allocation2]
        %v233 = vld [vmem:[%s232] sm:$0xff]
        %v234 = vld [vmem:[%s232 + $0x8] sm:$0xff]
        %v235 = vld [vmem:[#allocation5] sm:$0xff]
        %v236 = vld [vmem:[#allocation5 + $0x8] sm:$0xff]
        %v237 = vld [vmem:[#allocation5 + $0x10] sm:$0xff]
        %v238 = vld [vmem:[#allocation5 + $0x18] sm:$0xff]
        %v239 = vld [vmem:[#allocation5 + $0x20] sm:$0xff]
        %v240 = vld [vmem:[#allocation5 + $0x28] sm:$0xff]
        %v241 = vld [vmem:[#allocation5 + $0x30] sm:$0xff]
        %v242 = vld [vmem:[#allocation5 + $0x38] sm:$0xff]
        %v243 = vld [vmem:[%s2] sm:$0xff]
        %v244 = vlaneseq
        %v245 = vshrl.u32 %v244, 7
        %v246 = vsub.s32 0, %v245
        %v247 = vrot.slane %v235, %v246
        %v248 = vmul.f32 %v224, %v247
        %v249 = vmul.f32 %v225, %v247
        %v250 = vlaneseq
        %v251 = vshrl.u32 %v250, 7
        %v252 = vsub.s32 0, %v251
        %v253 = vrot.slane %v236, %v252
        %v254 = vmul.f32 %v227, %v253
        %v255 = vmul.f32 %v228, %v253
        %v256 = vadd.f32 %v248, %v254
        %v257 = vadd.f32 %v249, %v255
        %v258 = vlaneseq
        %v259 = vshrl.u32 %v258, 7
        %v260 = vsub.s32 0, %v259
        %v261 = vrot.slane %v237, %v260
        %v262 = vmul.f32 %v230, %v261
        %v263 = vmul.f32 %v231, %v261
        %v264 = vadd.f32 %v256, %v262
        %v265 = vadd.f32 %v257, %v263
        %v266 = vlaneseq
        %v267 = vshrl.u32 %v266, 7
        %v268 = vsub.s32 0, %v267
        %v269 = vrot.slane %v238, %v268
        %v270 = vmul.f32 %v233, %v269
        %v271 = vmul.f32 %v234, %v269
        %v272 = vadd.f32 %v264, %v270
        %v273 = vadd.f32 %v265, %v271
        %s275 = vtos %v243
        %v276 = vstv %s275
        %v278 = vadd.f32 %v272, %v276
        %v279 = vadd.f32 %v273, %v276
        %vm280 = vcmask 261120
        %281 = vst.msk [vmem:[%s221] sm:$0xff] %vm280, %v278
        %282 = vst.msk [vmem:[%s221 + $0x8] sm:$0xff] %vm280, %v279
        %v283 = vlaneseq
        %v284 = vshrl.u32 %v283, 7
        %v285 = vsub.s32 1, %v284
        %v286 = vrot.slane %v235, %v285
        %v287 = vmul.f32 %v224, %v286
        %v288 = vmul.f32 %v225, %v286
        %v289 = vlaneseq
        %v290 = vshrl.u32 %v289, 7
        %v291 = vsub.s32 1, %v290
        %v292 = vrot.slane %v236, %v291
        %v293 = vmul.f32 %v227, %v292
        %v294 = vmul.f32 %v228, %v292
        %v295 = vadd.f32 %v287, %v293
        %v296 = vadd.f32 %v288, %v294
        %v297 = vlaneseq
        %v298 = vshrl.u32 %v297, 7
        %v299 = vsub.s32 1, %v298
        %v300 = vrot.slane %v237, %v299
        %v301 = vmul.f32 %v230, %v300
        %v302 = vmul.f32 %v231, %v300
        %v303 = vadd.f32 %v295, %v301
        %v304 = vadd.f32 %v296, %v302
        %v305 = vlaneseq
        %v306 = vshrl.u32 %v305, 7
        %v307 = vsub.s32 1, %v306
        %v308 = vrot.slane %v238, %v307
        %v309 = vmul.f32 %v233, %v308
        %v310 = vmul.f32 %v234, %v308
        %v311 = vadd.f32 %v303, %v309
        %v312 = vadd.f32 %v304, %v310
        %v313 = vrot.slane %v243, 1
        %s314 = vtos %v313
        %v315 = vstv %s314
        %v317 = vadd.f32 %v311, %v315
        %v318 = vadd.f32 %v312, %v315
        %s319 = scalar_lea.vmem %s221, 16 [#allocation7]
        %320 = vst.msk [vmem:[%s319] sm:$0xff] %vm280, %v317
        %321 = vst.msk [vmem:[%s319 + $0x8] sm:$0xff] %vm280, %v318
        %v322 = vlaneseq
        %v323 = vshrl.u32 %v322, 7
        %v324 = vsub.s32 2, %v323
        %v325 = vrot.slane %v235, %v324
        %v326 = vmul.f32 %v224, %v325
        %v327 = vmul.f32 %v225, %v325
        %v328 = vlaneseq
        %v329 = vshrl.u32 %v328, 7
        %v330 = vsub.s32 2, %v329
        %v331 = vrot.slane %v236, %v330
        %v332 = vmul.f32 %v227, %v331
        %v333 = vmul.f32 %v228, %v331
        %v334 = vadd.f32 %v326, %v332
        %v335 = vadd.f32 %v327, %v333
        %v336 = vlaneseq
        %v337 = vshrl.u32 %v336, 7
        %v338 = vsub.s32 2, %v337
        %v339 = vrot.slane %v237, %v338
        %v340 = vmul.f32 %v230, %v339
        %v341 = vmul.f32 %v231, %v339
        %v342 = vadd.f32 %v334, %v340
        %v343 = vadd.f32 %v335, %v341
        %v344 = vlaneseq
        %v345 = vshrl.u32 %v344, 7
        %v346 = vsub.s32 2, %v345
        %v347 = vrot.slane %v238, %v346
        %v348 = vmul.f32 %v233, %v347
        %v349 = vmul.f32 %v234, %v347
        %v350 = vadd.f32 %v342, %v348
        %v351 = vadd.f32 %v343, %v349
        %v352 = vrot.slane %v243, 2
        %s353 = vtos %v352
        %v354 = vstv %s353
        %v356 = vadd.f32 %v350, %v354
        %v357 = vadd.f32 %v351, %v354
        %s358 = scalar_lea.vmem %s221, 32 [#allocation7]
        %359 = vst.msk [vmem:[%s358] sm:$0xff] %vm280, %v356
        %360 = vst.msk [vmem:[%s358 + $0x8] sm:$0xff] %vm280, %v357
        %v361 = vlaneseq
        %v362 = vshrl.u32 %v361, 7
        %v363 = vsub.s32 3, %v362
        %v364 = vrot.slane %v235, %v363
        %v365 = vmul.f32 %v224, %v364
        %v366 = vmul.f32 %v225, %v364
        %v367 = vlaneseq
        %v368 = vshrl.u32 %v367, 7
        %v369 = vsub.s32 3, %v368
        %v370 = vrot.slane %v236, %v369
        %v371 = vmul.f32 %v227, %v370
        %v372 = vmul.f32 %v228, %v370
        %v373 = vadd.f32 %v365, %v371
        %v374 = vadd.f32 %v366, %v372
        %v375 = vlaneseq
        %v376 = vshrl.u32 %v375, 7
        %v377 = vsub.s32 3, %v376
        %v378 = vrot.slane %v237, %v377
        %v379 = vmul.f32 %v230, %v378
        %v380 = vmul.f32 %v231, %v378
        %v381 = vadd.f32 %v373, %v379
        %v382 = vadd.f32 %v374, %v380
        %v383 = vlaneseq
        %v384 = vshrl.u32 %v383, 7
        %v385 = vsub.s32 3, %v384
        %v386 = vrot.slane %v238, %v385
        %v387 = vmul.f32 %v233, %v386
        %v388 = vmul.f32 %v234, %v386
        %v389 = vadd.f32 %v381, %v387
        %v390 = vadd.f32 %v382, %v388
        %v391 = vrot.slane %v243, 3
        %s392 = vtos %v391
        %v393 = vstv %s392
        %v395 = vadd.f32 %v389, %v393
        %v396 = vadd.f32 %v390, %v393
        %s397 = scalar_lea.vmem %s221, 48 [#allocation7]
        %398 = vst.msk [vmem:[%s397] sm:$0xff] %vm280, %v395
        %399 = vst.msk [vmem:[%s397 + $0x8] sm:$0xff] %vm280, %v396
        %v400 = vlaneseq
        %v401 = vshrl.u32 %v400, 7
        %v402 = vsub.s32 4, %v401
        %v403 = vrot.slane %v235, %v402
        %v404 = vmul.f32 %v224, %v403
        %v405 = vmul.f32 %v225, %v403
        %v406 = vlaneseq
        %v407 = vshrl.u32 %v406, 7
        %v408 = vsub.s32 4, %v407
        %v409 = vrot.slane %v236, %v408
        %v410 = vmul.f32 %v227, %v409
        %v411 = vmul.f32 %v228, %v409
        %v412 = vadd.f32 %v404, %v410
        %v413 = vadd.f32 %v405, %v411
        %v414 = vlaneseq
        %v415 = vshrl.u32 %v414, 7
        %v416 = vsub.s32 4, %v415
        %v417 = vrot.slane %v237, %v416
        %v418 = vmul.f32 %v230, %v417
        %v419 = vmul.f32 %v231, %v417
        %v420 = vadd.f32 %v412, %v418
        %v421 = vadd.f32 %v413, %v419
        %v422 = vlaneseq
        %v423 = vshrl.u32 %v422, 7
        %v424 = vsub.s32 4, %v423
        %v425 = vrot.slane %v238, %v424
        %v426 = vmul.f32 %v233, %v425
        %v427 = vmul.f32 %v234, %v425
        %v428 = vadd.f32 %v420, %v426
        %v429 = vadd.f32 %v421, %v427
        %v430 = vrot.slane %v243, 4
        %s431 = vtos %v430
        %v432 = vstv %s431
        %v434 = vadd.f32 %v428, %v432
        %v435 = vadd.f32 %v429, %v432
        %s436 = scalar_lea.vmem %s221, 64 [#allocation7]
        %437 = vst.msk [vmem:[%s436] sm:$0xff] %vm280, %v434
        %438 = vst.msk [vmem:[%s436 + $0x8] sm:$0xff] %vm280, %v435
        %v439 = vlaneseq
        %v440 = vshrl.u32 %v439, 7
        %v441 = vsub.s32 5, %v440
        %v442 = vrot.slane %v235, %v441
        %v443 = vmul.f32 %v224, %v442
        %v444 = vmul.f32 %v225, %v442
        %v445 = vlaneseq
        %v446 = vshrl.u32 %v445, 7
        %v447 = vsub.s32 5, %v446
        %v448 = vrot.slane %v236, %v447
        %v449 = vmul.f32 %v227, %v448
        %v450 = vmul.f32 %v228, %v448
        %v451 = vadd.f32 %v443, %v449
        %v452 = vadd.f32 %v444, %v450
        %v453 = vlaneseq
        %v454 = vshrl.u32 %v453, 7
        %v455 = vsub.s32 5, %v454
        %v456 = vrot.slane %v237, %v455
        %v457 = vmul.f32 %v230, %v456
        %v458 = vmul.f32 %v231, %v456
        %v459 = vadd.f32 %v451, %v457
        %v460 = vadd.f32 %v452, %v458
        %v461 = vlaneseq
        %v462 = vshrl.u32 %v461, 7
        %v463 = vsub.s32 5, %v462
        %v464 = vrot.slane %v238, %v463
        %v465 = vmul.f32 %v233, %v464
        %v466 = vmul.f32 %v234, %v464
        %v467 = vadd.f32 %v459, %v465
        %v468 = vadd.f32 %v460, %v466
        %v469 = vrot.slane %v243, 5
        %s470 = vtos %v469
        %v471 = vstv %s470
        %v473 = vadd.f32 %v467, %v471
        %v474 = vadd.f32 %v468, %v471
        %s475 = scalar_lea.vmem %s221, 80 [#allocation7]
        %476 = vst.msk [vmem:[%s475] sm:$0xff] %vm280, %v473
        %477 = vst.msk [vmem:[%s475 + $0x8] sm:$0xff] %vm280, %v474
        %v478 = vlaneseq
        %v479 = vshrl.u32 %v478, 7
        %v480 = vsub.s32 6, %v479
        %v481 = vrot.slane %v235, %v480
        %v482 = vmul.f32 %v224, %v481
        %v483 = vmul.f32 %v225, %v481
        %v484 = vlaneseq
        %v485 = vshrl.u32 %v484, 7
        %v486 = vsub.s32 6, %v485
        %v487 = vrot.slane %v236, %v486
        %v488 = vmul.f32 %v227, %v487
        %v489 = vmul.f32 %v228, %v487
        %v490 = vadd.f32 %v482, %v488
        %v491 = vadd.f32 %v483, %v489
        %v492 = vlaneseq
        %v493 = vshrl.u32 %v492, 7
        %v494 = vsub.s32 6, %v493
        %v495 = vrot.slane %v237, %v494
        %v496 = vmul.f32 %v230, %v495
        %v497 = vmul.f32 %v231, %v495
        %v498 = vadd.f32 %v490, %v496
        %v499 = vadd.f32 %v491, %v497
        %v500 = vlaneseq
        %v501 = vshrl.u32 %v500, 7
        %v502 = vsub.s32 6, %v501
        %v503 = vrot.slane %v238, %v502
        %v504 = vmul.f32 %v233, %v503
        %v505 = vmul.f32 %v234, %v503
        %v506 = vadd.f32 %v498, %v504
        %v507 = vadd.f32 %v499, %v505
        %v508 = vrot.slane %v243, 6
        %s509 = vtos %v508
        %v510 = vstv %s509
        %v512 = vadd.f32 %v506, %v510
        %v513 = vadd.f32 %v507, %v510
        %s514 = scalar_lea.vmem %s221, 96 [#allocation7]
        %515 = vst.msk [vmem:[%s514] sm:$0xff] %vm280, %v512
        %516 = vst.msk [vmem:[%s514 + $0x8] sm:$0xff] %vm280, %v513
        %v517 = vlaneseq
        %v518 = vshrl.u32 %v517, 7
        %v519 = vsub.s32 7, %v518
        %v520 = vrot.slane %v235, %v519
        %v521 = vmul.f32 %v224, %v520
        %v522 = vmul.f32 %v225, %v520
        %v523 = vlaneseq
        %v524 = vshrl.u32 %v523, 7
        %v525 = vsub.s32 7, %v524
        %v526 = vrot.slane %v236, %v525
        %v527 = vmul.f32 %v227, %v526
        %v528 = vmul.f32 %v228, %v526
        %v529 = vadd.f32 %v521, %v527
        %v530 = vadd.f32 %v522, %v528
        %v531 = vlaneseq
        %v532 = vshrl.u32 %v531, 7
        %v533 = vsub.s32 7, %v532
        %v534 = vrot.slane %v237, %v533
        %v535 = vmul.f32 %v230, %v534
        %v536 = vmul.f32 %v231, %v534
        %v537 = vadd.f32 %v529, %v535
        %v538 = vadd.f32 %v530, %v536
        %v539 = vlaneseq
        %v540 = vshrl.u32 %v539, 7
        %v541 = vsub.s32 7, %v540
        %v542 = vrot.slane %v238, %v541
        %v543 = vmul.f32 %v233, %v542
        %v544 = vmul.f32 %v234, %v542
        %v545 = vadd.f32 %v537, %v543
        %v546 = vadd.f32 %v538, %v544
        %v547 = vrot.slane %v243, 7
        %s548 = vtos %v547
        %v549 = vstv %s548
        %v551 = vadd.f32 %v545, %v549
        %v552 = vadd.f32 %v546, %v549
        %s553 = scalar_lea.vmem %s221, 112 [#allocation7]
        %554 = vst.msk [vmem:[%s553] sm:$0xff] %vm280, %v551
        %555 = vst.msk [vmem:[%s553 + $0x8] sm:$0xff] %vm280, %v552
        %v556 = vlaneseq
        %v557 = vshrl.u32 %v556, 7
        %v558 = vsub.s32 0, %v557
        %v559 = vrot.slane %v239, %v558
        %v560 = vmul.f32 %v224, %v559
        %v561 = vmul.f32 %v225, %v559
        %v562 = vlaneseq
        %v563 = vshrl.u32 %v562, 7
        %v564 = vsub.s32 0, %v563
        %v565 = vrot.slane %v240, %v564
        %v566 = vmul.f32 %v227, %v565
        %v567 = vmul.f32 %v228, %v565
        %v568 = vadd.f32 %v560, %v566
        %v569 = vadd.f32 %v561, %v567
        %v570 = vlaneseq
        %v571 = vshrl.u32 %v570, 7
        %v572 = vsub.s32 0, %v571
        %v573 = vrot.slane %v241, %v572
        %v574 = vmul.f32 %v230, %v573
        %v575 = vmul.f32 %v231, %v573
        %v576 = vadd.f32 %v568, %v574
        %v577 = vadd.f32 %v569, %v575
        %v578 = vlaneseq
        %v579 = vshrl.u32 %v578, 7
        %v580 = vsub.s32 0, %v579
        %v581 = vrot.slane %v242, %v580
        %v582 = vmul.f32 %v233, %v581
        %v583 = vmul.f32 %v234, %v581
        %v584 = vadd.f32 %v576, %v582
        %v585 = vadd.f32 %v577, %v583
        %v586 = vadd.f32 %v584, %v276
        %v587 = vadd.f32 %v585, %v276
        %590 = vrot.lane.b32.xlu0 %v586, 32
        %v591 = vpop.permute.xlu0 %590
        %592 = vrot.lane.b32.xlu0 %v587, 32
        %v593 = vpop.permute.xlu0 %592
        %vm596 = vcmask 523520
        %597 = vst.msk [vmem:[%s221] sm:$0xff] %vm596, %v591
        %598 = vst.msk [vmem:[%s221 + $0x8] sm:$0xff] %vm596, %v593
        %v599 = vlaneseq
        %v600 = vshrl.u32 %v599, 7
        %v601 = vsub.s32 1, %v600
        %v602 = vrot.slane %v239, %v601
        %v603 = vmul.f32 %v224, %v602
        %v604 = vmul.f32 %v225, %v602
        %v605 = vlaneseq
        %v606 = vshrl.u32 %v605, 7
        %v607 = vsub.s32 1, %v606
        %v608 = vrot.slane %v240, %v607
        %v609 = vmul.f32 %v227, %v608
        %v610 = vmul.f32 %v228, %v608
        %v611 = vadd.f32 %v603, %v609
        %v612 = vadd.f32 %v604, %v610
        %v613 = vlaneseq
        %v614 = vshrl.u32 %v613, 7
        %v615 = vsub.s32 1, %v614
        %v616 = vrot.slane %v241, %v615
        %v617 = vmul.f32 %v230, %v616
        %v618 = vmul.f32 %v231, %v616
        %v619 = vadd.f32 %v611, %v617
        %v620 = vadd.f32 %v612, %v618
        %v621 = vlaneseq
        %v622 = vshrl.u32 %v621, 7
        %v623 = vsub.s32 1, %v622
        %v624 = vrot.slane %v242, %v623
        %v625 = vmul.f32 %v233, %v624
        %v626 = vmul.f32 %v234, %v624
        %v627 = vadd.f32 %v619, %v625
        %v628 = vadd.f32 %v620, %v626
        %v629 = vadd.f32 %v627, %v315
        %v630 = vadd.f32 %v628, %v315
        %633 = vrot.lane.b32.xlu0 %v629, 32
        %v634 = vpop.permute.xlu0 %633
        %635 = vrot.lane.b32.xlu0 %v630, 32
        %v636 = vpop.permute.xlu0 %635
        %639 = vst.msk [vmem:[%s319] sm:$0xff] %vm596, %v634
        %640 = vst.msk [vmem:[%s319 + $0x8] sm:$0xff] %vm596, %v636
        %v641 = vlaneseq
        %v642 = vshrl.u32 %v641, 7
        %v643 = vsub.s32 2, %v642
        %v644 = vrot.slane %v239, %v643
        %v645 = vmul.f32 %v224, %v644
        %v646 = vmul.f32 %v225, %v644
        %v647 = vlaneseq
        %v648 = vshrl.u32 %v647, 7
        %v649 = vsub.s32 2, %v648
        %v650 = vrot.slane %v240, %v649
        %v651 = vmul.f32 %v227, %v650
        %v652 = vmul.f32 %v228, %v650
        %v653 = vadd.f32 %v645, %v651
        %v654 = vadd.f32 %v646, %v652
        %v655 = vlaneseq
        %v656 = vshrl.u32 %v655, 7
        %v657 = vsub.s32 2, %v656
        %v658 = vrot.slane %v241, %v657
        %v659 = vmul.f32 %v230, %v658
        %v660 = vmul.f32 %v231, %v658
        %v661 = vadd.f32 %v653, %v659
        %v662 = vadd.f32 %v654, %v660
        %v663 = vlaneseq
        %v664 = vshrl.u32 %v663, 7
        %v665 = vsub.s32 2, %v664
        %v666 = vrot.slane %v242, %v665
        %v667 = vmul.f32 %v233, %v666
        %v668 = vmul.f32 %v234, %v666
        %v669 = vadd.f32 %v661, %v667
        %v670 = vadd.f32 %v662, %v668
        %v671 = vadd.f32 %v669, %v354
        %v672 = vadd.f32 %v670, %v354
        %675 = vrot.lane.b32.xlu0 %v671, 32
        %v676 = vpop.permute.xlu0 %675
        %677 = vrot.lane.b32.xlu0 %v672, 32
        %v678 = vpop.permute.xlu0 %677
        %681 = vst.msk [vmem:[%s358] sm:$0xff] %vm596, %v676
        %682 = vst.msk [vmem:[%s358 + $0x8] sm:$0xff] %vm596, %v678
        %v683 = vlaneseq
        %v684 = vshrl.u32 %v683, 7
        %v685 = vsub.s32 3, %v684
        %v686 = vrot.slane %v239, %v685
        %v687 = vmul.f32 %v224, %v686
        %v688 = vmul.f32 %v225, %v686
        %v689 = vlaneseq
        %v690 = vshrl.u32 %v689, 7
        %v691 = vsub.s32 3, %v690
        %v692 = vrot.slane %v240, %v691
        %v693 = vmul.f32 %v227, %v692
        %v694 = vmul.f32 %v228, %v692
        %v695 = vadd.f32 %v687, %v693
        %v696 = vadd.f32 %v688, %v694
        %v697 = vlaneseq
        %v698 = vshrl.u32 %v697, 7
        %v699 = vsub.s32 3, %v698
        %v700 = vrot.slane %v241, %v699
        %v701 = vmul.f32 %v230, %v700
        %v702 = vmul.f32 %v231, %v700
        %v703 = vadd.f32 %v695, %v701
        %v704 = vadd.f32 %v696, %v702
        %v705 = vlaneseq
        %v706 = vshrl.u32 %v705, 7
        %v707 = vsub.s32 3, %v706
        %v708 = vrot.slane %v242, %v707
        %v709 = vmul.f32 %v233, %v708
        %v710 = vmul.f32 %v234, %v708
        %v711 = vadd.f32 %v703, %v709
        %v712 = vadd.f32 %v704, %v710
        %v713 = vadd.f32 %v711, %v393
        %v714 = vadd.f32 %v712, %v393
        %717 = vrot.lane.b32.xlu0 %v713, 32
        %v718 = vpop.permute.xlu0 %717
        %719 = vrot.lane.b32.xlu0 %v714, 32
        %v720 = vpop.permute.xlu0 %719
        %723 = vst.msk [vmem:[%s397] sm:$0xff] %vm596, %v718
        %724 = vst.msk [vmem:[%s397 + $0x8] sm:$0xff] %vm596, %v720
        %v725 = vlaneseq
        %v726 = vshrl.u32 %v725, 7
        %v727 = vsub.s32 4, %v726
        %v728 = vrot.slane %v239, %v727
        %v729 = vmul.f32 %v224, %v728
        %v730 = vmul.f32 %v225, %v728
        %v731 = vlaneseq
        %v732 = vshrl.u32 %v731, 7
        %v733 = vsub.s32 4, %v732
        %v734 = vrot.slane %v240, %v733
        %v735 = vmul.f32 %v227, %v734
        %v736 = vmul.f32 %v228, %v734
        %v737 = vadd.f32 %v729, %v735
        %v738 = vadd.f32 %v730, %v736
        %v739 = vlaneseq
        %v740 = vshrl.u32 %v739, 7
        %v741 = vsub.s32 4, %v740
        %v742 = vrot.slane %v241, %v741
        %v743 = vmul.f32 %v230, %v742
        %v744 = vmul.f32 %v231, %v742
        %v745 = vadd.f32 %v737, %v743
        %v746 = vadd.f32 %v738, %v744
        %v747 = vlaneseq
        %v748 = vshrl.u32 %v747, 7
        %v749 = vsub.s32 4, %v748
        %v750 = vrot.slane %v242, %v749
        %v751 = vmul.f32 %v233, %v750
        %v752 = vmul.f32 %v234, %v750
        %v753 = vadd.f32 %v745, %v751
        %v754 = vadd.f32 %v746, %v752
        %v755 = vadd.f32 %v753, %v432
        %v756 = vadd.f32 %v754, %v432
        %759 = vrot.lane.b32.xlu0 %v755, 32
        %v760 = vpop.permute.xlu0 %759
        %761 = vrot.lane.b32.xlu0 %v756, 32
        %v762 = vpop.permute.xlu0 %761
        %765 = vst.msk [vmem:[%s436] sm:$0xff] %vm596, %v760
        %766 = vst.msk [vmem:[%s436 + $0x8] sm:$0xff] %vm596, %v762
        %v767 = vlaneseq
        %v768 = vshrl.u32 %v767, 7
        %v769 = vsub.s32 5, %v768
        %v770 = vrot.slane %v239, %v769
        %v771 = vmul.f32 %v224, %v770
        %v772 = vmul.f32 %v225, %v770
        %v773 = vlaneseq
        %v774 = vshrl.u32 %v773, 7
        %v775 = vsub.s32 5, %v774
        %v776 = vrot.slane %v240, %v775
        %v777 = vmul.f32 %v227, %v776
        %v778 = vmul.f32 %v228, %v776
        %v779 = vadd.f32 %v771, %v777
        %v780 = vadd.f32 %v772, %v778
        %v781 = vlaneseq
        %v782 = vshrl.u32 %v781, 7
        %v783 = vsub.s32 5, %v782
        %v784 = vrot.slane %v241, %v783
        %v785 = vmul.f32 %v230, %v784
        %v786 = vmul.f32 %v231, %v784
        %v787 = vadd.f32 %v779, %v785
        %v788 = vadd.f32 %v780, %v786
        %v789 = vlaneseq
        %v790 = vshrl.u32 %v789, 7
        %v791 = vsub.s32 5, %v790
        %v792 = vrot.slane %v242, %v791
        %v793 = vmul.f32 %v233, %v792
        %v794 = vmul.f32 %v234, %v792
        %v795 = vadd.f32 %v787, %v793
        %v796 = vadd.f32 %v788, %v794
        %v797 = vadd.f32 %v795, %v471
        %v798 = vadd.f32 %v796, %v471
        %801 = vrot.lane.b32.xlu0 %v797, 32
        %v802 = vpop.permute.xlu0 %801
        %803 = vrot.lane.b32.xlu0 %v798, 32
        %v804 = vpop.permute.xlu0 %803
        %807 = vst.msk [vmem:[%s475] sm:$0xff] %vm596, %v802
        %808 = vst.msk [vmem:[%s475 + $0x8] sm:$0xff] %vm596, %v804
        %v809 = vlaneseq
        %v810 = vshrl.u32 %v809, 7
        %v811 = vsub.s32 6, %v810
        %v812 = vrot.slane %v239, %v811
        %v813 = vmul.f32 %v224, %v812
        %v814 = vmul.f32 %v225, %v812
        %v815 = vlaneseq
        %v816 = vshrl.u32 %v815, 7
        %v817 = vsub.s32 6, %v816
        %v818 = vrot.slane %v240, %v817
        %v819 = vmul.f32 %v227, %v818
        %v820 = vmul.f32 %v228, %v818
        %v821 = vadd.f32 %v813, %v819
        %v822 = vadd.f32 %v814, %v820
        %v823 = vlaneseq
        %v824 = vshrl.u32 %v823, 7
        %v825 = vsub.s32 6, %v824
        %v826 = vrot.slane %v241, %v825
        %v827 = vmul.f32 %v230, %v826
        %v828 = vmul.f32 %v231, %v826
        %v829 = vadd.f32 %v821, %v827
        %v830 = vadd.f32 %v822, %v828
        %v831 = vlaneseq
        %v832 = vshrl.u32 %v831, 7
        %v833 = vsub.s32 6, %v832
        %v834 = vrot.slane %v242, %v833
        %v835 = vmul.f32 %v233, %v834
        %v836 = vmul.f32 %v234, %v834
        %v837 = vadd.f32 %v829, %v835
        %v838 = vadd.f32 %v830, %v836
        %v839 = vadd.f32 %v837, %v510
        %v840 = vadd.f32 %v838, %v510
        %843 = vrot.lane.b32.xlu0 %v839, 32
        %v844 = vpop.permute.xlu0 %843
        %845 = vrot.lane.b32.xlu0 %v840, 32
        %v846 = vpop.permute.xlu0 %845
        %849 = vst.msk [vmem:[%s514] sm:$0xff] %vm596, %v844
        %850 = vst.msk [vmem:[%s514 + $0x8] sm:$0xff] %vm596, %v846
        %v851 = vlaneseq
        %v852 = vshrl.u32 %v851, 7
        %v853 = vsub.s32 7, %v852
        %v854 = vrot.slane %v239, %v853
        %v855 = vmul.f32 %v224, %v854
        %v856 = vmul.f32 %v225, %v854
        %v857 = vlaneseq
        %v858 = vshrl.u32 %v857, 7
        %v859 = vsub.s32 7, %v858
        %v860 = vrot.slane %v240, %v859
        %v861 = vmul.f32 %v227, %v860
        %v862 = vmul.f32 %v228, %v860
        %v863 = vadd.f32 %v855, %v861
        %v864 = vadd.f32 %v856, %v862
        %v865 = vlaneseq
        %v866 = vshrl.u32 %v865, 7
        %v867 = vsub.s32 7, %v866
        %v868 = vrot.slane %v241, %v867
        %v869 = vmul.f32 %v230, %v868
        %v870 = vmul.f32 %v231, %v868
        %v871 = vadd.f32 %v863, %v869
        %v872 = vadd.f32 %v864, %v870
        %v873 = vlaneseq
        %v874 = vshrl.u32 %v873, 7
        %v875 = vsub.s32 7, %v874
        %v876 = vrot.slane %v242, %v875
        %v877 = vmul.f32 %v233, %v876
        %v878 = vmul.f32 %v234, %v876
        %v879 = vadd.f32 %v871, %v877
        %v880 = vadd.f32 %v872, %v878
        %v881 = vadd.f32 %v879, %v549
        %v882 = vadd.f32 %v880, %v549
        %885 = vrot.lane.b32.xlu0 %v881, 32
        %v886 = vpop.permute.xlu0 %885
        %887 = vrot.lane.b32.xlu0 %v882, 32
        %v888 = vpop.permute.xlu0 %887
        %891 = vst.msk [vmem:[%s553] sm:$0xff] %vm596, %v886
        %892 = vst.msk [vmem:[%s553 + $0x8] sm:$0xff] %vm596, %v888
        %s893 = sand.u32 %s113, 1
        %s894 = scalar_lea.sflag [#allocation4], %s893
        %s895 = sand.u32 %s113, 1
        %s896 = smul.addr %s895, 128
        %s897 = scalar_lea.vmem [#allocation7], %s896
        // Predicated region
        $region41: #{tpu_custom_call.1} parent=31 // pred_check
          %p898 = pneg %p123
        $region42: #{tpu_custom_call.1} parent=31 // pred_check_branch
          %900 = sbr.rel (%p898) target = $region44
        $region43: #{tpu_custom_call.1} parent=31 // pred_region
          %s901 = smul.u32 2, %s26
          %s903 = ssub.s32 2048, 2048
          %904 = vsyncadd %s894, %s903
          %s905 = smul.addr %s25, 16
          %s906 = sadd.s32 %s901, %s905
          %s907 = smul.addr %s906, 128
          %s908 = scalar_lea.hbm %s3, %s907
          %s909 = sshll.u32 %s897, 4
          %s910 = int_to_ptr.vmem [resolvable:$true] %s909
          %915 = dma.vmem_to_hbm [thread:$0]  %s910, 2048, %s908, %s894, 128, 128, 8
        $region44: #{tpu_custom_call.1} parent=31 // pred_fallthru
          _
      $region32: #{tpu_custom_call.1} parent=5 // pred_fallthru
        _
      %p916 = scmp.le.s32.totalorder 2, %s16
      // Predicated region
      $region45: #{tpu_custom_call.1} parent=5 // pred_check
        %p917 = pneg %p916
      $region46: #{tpu_custom_call.1} parent=5 // pred_check_branch
        %919 = sbr.rel (%p917) target = $region48
      $region47: #{tpu_custom_call.1} parent=5 // pred_region
        %s920 = ssub.s32 %s16, 2
        // Predicated region
        $region49: #{tpu_custom_call.1} parent=47 // pred_check
          %p921 = pneg %p129
        $region50: #{tpu_custom_call.1} parent=47 // pred_check_branch
          %923 = sbr.rel (%p921) target = $region52
        $region51: #{tpu_custom_call.1} parent=47 // pred_region
          %s924 = sand.u32 %s114, 1
          %s925 = scalar_lea.sflag [#allocation4], %s924
          %s926 = sand.u32 %s114, 1
          %s927 = smul.addr %s926, 128
          %s928 = scalar_lea.vmem [#allocation7], %s927
          %929 = dma.done %s925, 2048
        $region52: #{tpu_custom_call.1} parent=47 // pred_fallthru
          _
      $region48: #{tpu_custom_call.1} parent=5 // pred_fallthru
        _
    $region6: #{tpu_custom_call.1} parent=1 // loop_footer
      %s20 = sadd.s32 1, %s16
    $region7: #{tpu_custom_call.1} parent=1 // loop_footer_branch
      %15 = sbr.rel target = $region3
    $region8: #{tpu_custom_call.1} parent=1 // loop_exit
      _
    %930 = vsyncpa [#allocation3], 1
    %s931 = scalar_lea.sflag [#allocation3], 1
    %932 = vsyncpa %s931, 1
    %933 = vsyncpa [#allocation6], 1
    %934 = vsyncpa [#allocation4], 1
    %s935 = scalar_lea.sflag [#allocation4], 1
    %936 = vsyncpa %s935, 1

</llo_original>
